<compile_context>
chip_gen: v7x
topology: tpu7x:2x2x1
jax: 0.10.0
libtpu: 0.0.40
codegen_flags: <defaults>
</compile_context>

<pallas_src>
import inspect

import numpy as np
import jax
import jax.numpy as jnp
from jax.experimental import pallas as pl
from jax.experimental.pallas import tpu as pltpu


# ---------------------------------------------------------------------------
# Feature probe: pipeline_mode=pl.Buffered(1) for constant (weight) blocks.
# ---------------------------------------------------------------------------
def _supports_pipeline_mode():
    try:
        return hasattr(pl, "Buffered") and (
            "pipeline_mode" in inspect.signature(pl.BlockSpec).parameters)
    except Exception:
        return False


_HAS_PIPELINE_MODE = _supports_pipeline_mode()


def _weight_spec(block_shape, index_map, single_buffer):
    # Weights/biases with a constant block index are only fetched once; a single
    # buffer halves their VMEM footprint (matters most on v7x's 64 MiB VMEM).
    if single_buffer and _HAS_PIPELINE_MODE:
        return pl.BlockSpec(block_shape, index_map, pipeline_mode=pl.Buffered(1))
    return pl.BlockSpec(block_shape, index_map)


def _pick_group_size(d, m1, target_k=256):
    """Largest divisor g of d with g*m1 <= target_k; g must be sublane-friendly."""
    candidates = [g for g in range(1, d + 1)
                  if d % g == 0 and (g % 8 == 0 or g == d)]
    ok = [g for g in candidates if g * m1 <= target_k]
    return max(ok) if ok else min(candidates)


# ---------------------------------------------------------------------------
# Fused forward kernel (factory over the number of LocallyConnected layers)
# ---------------------------------------------------------------------------
def _make_fused_kernel(n_lc):
    def kernel(x_ref, w1_ref, b1_ref, *rest):
        o_ref = rest[-1]
        lc_refs = rest[:-1]

        # fc1_pos(x) - fc1_neg(x), folded into one MXU matmul on pre-diffed
        # weights.  Transposed layout: h = W1_g @ x^T  -> [g*m1, TM], f32 acc.
        h = jnp.dot(w1_ref[...], x_ref[...],
                    preferred_element_type=jnp.float32) + b1_ref[...]

        # LocallyConnected layers: sigmoid (EUP, f32) + within-group
        # block-diagonal MXU matmul; h stays resident in vregs/VMEM throughout.
        for l in range(n_lc):
            w = lc_refs[2 * l][...]        # [g*m_out, g*m_in]  (matmul dtype)
            b = lc_refs[2 * l + 1][...]    # [g*m_out, 1]       (f32)
            z = jax.nn.sigmoid(h)          # f32 (v5e has no bf16 VPU/EUP)
            h = jnp.dot(w, z.astype(w.dtype),
                        preferred_element_type=jnp.float32) + b

        # Last layer has m_out == 1, so h rows are exactly the g group nodes
        # (the squeeze(dim=2) is implicit); store is lane-dense over TM.
        o_ref[...] = h.astype(o_ref.dtype)

    return kernel


# ---------------------------------------------------------------------------
# One-time parameter preparation (fold, transposes, per-group block-diag build)
# ---------------------------------------------------------------------------
def prepare_params(params, dims, group_size=None, matmul_dtype=jnp.bfloat16):
    d, m1 = dims[0], dims[1]
    g = group_size or _pick_group_size(d, m1)
    assert d % g == 0
    G = d // g

    # Fold pos/neg Linear into a single diffed weight / bias.  The torch Linear
    # weight is already [out = d*m1, in = d] with rows ordered (node j, unit m),
    # which is exactly the LHS needed for h^T = W1 @ x^T in the transposed
    # layout -- no transpose required.
    w1 = (params["w1_pos"] - params["w1_neg"]).astype(matmul_dtype)        # [d*m1, d]
    b1 = (params["b1_pos"] - params["b1_neg"]).reshape(d * m1, 1)          # [d*m1, 1]
    b1 = b1.astype(jnp.float32)

    # LocallyConnected weight [d, m_in, m_out] -> per-group block-diagonal,
    # transposed for the batch-on-lanes layout, stacked over groups along rows:
    #   wbd[(j_local*m_out + k) + group_offset, J_local*m_in + m]
    #       = delta(j_local, J_local) * w[j, m, k]
    fc2 = []
    for (w, b) in params["fc2"]:
        d_, m_in, m_out = w.shape
        wg = w.reshape(G, g, m_in, m_out)
        eye = jnp.eye(g, dtype=w.dtype)
        wbd = jnp.einsum("jJ,gjmk->gjkJm", eye, wg).reshape(d_ * m_out, g * m_in)
        bfl = b.reshape(d_ * m_out, 1).astype(jnp.float32)
        fc2.append((wbd.astype(matmul_dtype), bfl))

    return {"w1": w1, "b1": b1, "fc2": fc2,
            "g": g, "G": G, "dims": tuple(dims), "matmul_dtype": matmul_dtype}


# ---------------------------------------------------------------------------
# Fused forward (one pallas_call; grid = (node groups, batch tiles))
# ---------------------------------------------------------------------------
def notears_mlp_forward(prepped, x, block_batch=512):
    dims = prepped["dims"]
    d, m1 = dims[0], dims[1]
    g, G = prepped["g"], prepped["G"]
    n_lc = len(dims) - 2
    n = x.shape[0]
    mm_dtype = prepped["matmul_dtype"]

    # Transposed (batch-on-lanes) layout; single one-time cast of x to the
    # matmul dtype (halves the input DMA on the bf16 path).
    x_t = x.T.astype(mm_dtype)                                             # [d, n]

    # Batch tile on the lane axis: multiple of 128 unless it covers the batch.
    tm = min(block_batch, n)
    if tm != n:
        tm = max(128, (tm // 128) * 128)
    nb = pl.cdiv(n, tm)
    if nb < 2 and n >= 256:
        # v7x has 2 TensorCores; give the "parallel" batch axis >= 2 steps.
        tm = max(128, ((n // 2) // 128) * 128)
        nb = pl.cdiv(n, tm)
    grid = (G, nb)   # weights change only on the (outer) group axis

    operands = [x_t, prepped["w1"], prepped["b1"]]
    for (wbd, bfl) in prepped["fc2"]:
        operands += [wbd, bfl]

    # Advisory cost estimate (helps XLA schedule around the custom call).
    flops = 2 * n * d * (d * m1)
    trans = 0
    for l in range(n_lc):
        m_in, m_out = dims[l + 1], dims[l + 2]
        flops += 2 * n * (g * m_in) * (g * m_out) * G   # MXU work actually issued
        trans += n * d * m_in                           # sigmoids
    bytes_accessed = int(x_t.size) * np.dtype(mm_dtype).itemsize * G + n * d * 4
    bytes_accessed += sum(int(a.size) * a.dtype.itemsize for a in operands[1:])

    # Resident-VMEM estimate; raise the scoped limit only if the defaults
    # (16 MiB v5e / 32 MiB v6e,v7x) would be exceeded.  Cap below v7x's 64 MiB.
    w_bytes = sum(int(a.size) * a.dtype.itemsize for a in operands[1:]) // G
    io_bytes = d * tm * np.dtype(mm_dtype).itemsize + g * tm * 4
    need = 2 * w_bytes + 2 * io_bytes + (2 << 20)
    vmem_kw = ({"vmem_limit_bytes": int(min(need * 1.5, 96 << 20))}
               if need > (16 << 20) else {})

    def _run(single_buffer):
        in_specs = [
            pl.BlockSpec((d, tm), lambda gi, bi: (0, bi)),                 # x^T tile
            _weight_spec((g * m1, d), lambda gi, bi: (gi, 0), single_buffer),
            _weight_spec((g * m1, 1), lambda gi, bi: (gi, 0), single_buffer),
        ]
        for l in range(n_lc):
            m_in, m_out = dims[l + 1], dims[l + 2]
            in_specs.append(_weight_spec((g * m_out, g * m_in),
                                         lambda gi, bi: (gi, 0), single_buffer))
            in_specs.append(_weight_spec((g * m_out, 1),
                                         lambda gi, bi: (gi, 0), single_buffer))
        out_spec = pl.BlockSpec((g, tm), lambda gi, bi: (gi, bi))          # lane-dense

        out_t = pl.pallas_call(
            _make_fused_kernel(n_lc),
            out_shape=jax.ShapeDtypeStruct((d, n), jnp.float32),
            grid_spec=pltpu.PrefetchScalarGridSpec(
                num_scalar_prefetch=0,
                grid=grid,
                in_specs=in_specs,
                out_specs=out_spec,
            ),
            compiler_params=pltpu.CompilerParams(
                dimension_semantics=("parallel", "parallel"), **vmem_kw),
            cost_estimate=pl.CostEstimate(flops=int(flops),
                                          transcendentals=int(trans),
                                          bytes_accessed=int(bytes_accessed)),
        )(*operands)
        return out_t.T   # back to [n, d] (layout plumbing outside the kernel)

    use_buf1 = (G == 1) and _HAS_PIPELINE_MODE   # index maps constant only if G == 1
    if use_buf1:
        try:
            return _run(True)
        except Exception:
            # Fall back if this jax/Mosaic build rejects Buffered(1).
            pass
    return _run(False)


# ---------------------------------------------------------------------------
# Parameter init (deterministic, torch-Linear-style uniform fan-in bounds)
# ---------------------------------------------------------------------------
def init_params(key, dims):
    d, m1 = dims[0], dims[1]
    n_lc = len(dims) - 2
    keys = jax.random.split(key, 4 + 2 * n_lc)
    k = iter(keys)

    def unif(kk, shape, fan_in):
        bound = 1.0 / np.sqrt(fan_in)
        return jax.random.uniform(kk, shape, jnp.float32, -bound, bound)

    params = {
        "w1_pos": unif(next(k), (d * m1, d), d),   # torch Linear weight [out, in]
        "b1_pos": unif(next(k), (1, d * m1), d),
        "w1_neg": unif(next(k), (d * m1, d), d),
        "b1_neg": unif(next(k), (1, d * m1), d),
        "fc2": [],
    }
    for l in range(n_lc):
        m_in, m_out = dims[l + 1], dims[l + 2]
        w = unif(next(k), (d, m_in, m_out), m_in)
        b = unif(next(k), (d, m_out), m_in)
        params["fc2"].append((w, b))
    return params


# ---------------------------------------------------------------------------
# Pure-JAX reference (uses the un-folded pos/neg params, torch semantics)
# ---------------------------------------------------------------------------
def notears_mlp_reference(params, x, dims):
    d, m1 = dims[0], dims[1]
    pos = x @ params["w1_pos"].T + params["b1_pos"]
    neg = x @ params["w1_neg"].T + params["b1_neg"]
    h = (pos - neg).reshape(-1, d, m1)
    for (w, b) in params["fc2"]:
        z = jax.nn.sigmoid(h)
        h = jnp.einsum("njm,jmk->njk", z, w) + b[None]
    return h[:, :, 0]


if __name__ == "__main__":
    key = jax.random.PRNGKey(0)
    kx, kp, kp2 = jax.random.split(key, 3)

    # --- standard NOTEARS-MLP shape: d=8 nodes, m1=16 hidden/node, 1 output ---
    dims = [8, 16, 1]
    params = init_params(kp, dims)

    # 1) exact f32 path, batch divisible by the tile (grid = (1, 2))
    n = 256
    x = jax.random.normal(kx, (n, dims[0]), jnp.float32)
    ref = notears_mlp_reference(params, x, dims)
    prepped_f32 = prepare_params(params, dims, matmul_dtype=jnp.float32)
    out = jax.block_until_ready(notears_mlp_forward(prepped_f32, x, block_batch=128))
    assert out.shape == (n, dims[0]), out.shape
    np.testing.assert_allclose(np.asarray(out), np.asarray(ref), rtol=1e-5, atol=1e-5)

    # 2) ragged batch (n not a multiple of the tile): padded rows must be dropped
    n2 = 200
    x2 = jax.random.normal(jax.random.fold_in(kx, 1), (n2, dims[0]), jnp.float32)
    ref2 = notears_mlp_reference(params, x2, dims)
    out2 = jax.block_until_ready(notears_mlp_forward(prepped_f32, x2, block_batch=128))
    assert out2.shape == (n2, dims[0]), out2.shape
    np.testing.assert_allclose(np.asarray(out2), np.asarray(ref2), rtol=1e-5, atol=1e-5)

    # 3) default bf16-MXU-operand path (v5e/v6e/v7x friendly), looser tolerance
    prepped_bf16 = prepare_params(params, dims)    # matmul_dtype = bf16
    out3 = jax.block_until_ready(notears_mlp_forward(prepped_bf16, x, block_batch=128))
    np.testing.assert_allclose(np.asarray(out3), np.asarray(ref), rtol=5e-2, atol=5e-2)

    # 4) deeper net exercises the multi-LC-layer loop (f32, tight tolerance)
    dims2 = [8, 16, 8, 1]
    params2 = init_params(kp2, dims2)
    x4 = jax.random.normal(jax.random.fold_in(kx, 2), (128, dims2[0]), jnp.float32)
    ref4 = notears_mlp_reference(params2, x4, dims2)
    prepped2 = prepare_params(params2, dims2, matmul_dtype=jnp.float32)
    out4 = jax.block_until_ready(notears_mlp_forward(prepped2, x4, block_batch=128))
    np.testing.assert_allclose(np.asarray(out4), np.asarray(ref4), rtol=1e-5, atol=1e-5)

    print("KERNEL_OK")
</pallas_src>

<mosaic_0001>
module attributes {stable_mosaic.version = 11 : i64} {
  func.func @kernel(%arg0: i32, %arg1: i32, %arg2: memref<8x128xf32, #tpu.memory_space<vmem>>, %arg3: memref<128x8xf32, #tpu.memory_space<vmem>>, %arg4: memref<128x1xf32, #tpu.memory_space<vmem>>, %arg5: memref<8x128xf32, #tpu.memory_space<vmem>>, %arg6: memref<8x1xf32, #tpu.memory_space<vmem>>, %arg7: memref<8x128xf32, #tpu.memory_space<vmem>>) attributes {dimension_semantics = [#tpu.dimension_semantics<parallel>, #tpu.dimension_semantics<parallel>], iteration_bounds = array<i64: 1, 2>, scalar_prefetch = 0 : i64, scratch_operands = 0 : i64, tpu.core_type = #tpu.core_type<tc>, window_params = [{transform_indices = @transform_0, window_bounds = array<i64: 8, 128>}, {pipeline_mode = #tpu.pipeline_mode<synchronous>, transform_indices = @transform_1, window_bounds = array<i64: 128, 8>}, {pipeline_mode = #tpu.pipeline_mode<synchronous>, transform_indices = @transform_2, window_bounds = array<i64: 128, 1>}, {pipeline_mode = #tpu.pipeline_mode<synchronous>, transform_indices = @transform_3, window_bounds = array<i64: 8, 128>}, {pipeline_mode = #tpu.pipeline_mode<synchronous>, transform_indices = @transform_4, window_bounds = array<i64: 8, 1>}, {transform_indices = @transform_5, window_bounds = array<i64: 8, 128>}]} {
    %c0 = arith.constant 0 : index
    %c0_0 = arith.constant 0 : index
    %0 = vector.load %arg3[%c0, %c0_0] : memref<128x8xf32, #tpu.memory_space<vmem>>, vector<128x8xf32>
    %c0_1 = arith.constant 0 : index
    %c0_2 = arith.constant 0 : index
    %1 = vector.load %arg2[%c0_1, %c0_2] : memref<8x128xf32, #tpu.memory_space<vmem>>, vector<8x128xf32>
    %cst = arith.constant dense<0.000000e+00> : vector<128x128xf32>
    %2 = tpu.matmul %0, %1, %cst {dimension_numbers = #tpu.dot_dimension_numbers<[1], [0], [0], [1], [0, 0, 1, 1], [], []>} : vector<128x8xf32>, vector<8x128xf32>, vector<128x128xf32> -> vector<128x128xf32>
    %c0_3 = arith.constant 0 : index
    %c0_4 = arith.constant 0 : index
    %3 = vector.load %arg4[%c0_3, %c0_4] : memref<128x1xf32, #tpu.memory_space<vmem>>, vector<128x1xf32>
    %4 = vector.broadcast %3 : vector<128x1xf32> to vector<128x128xf32>
    %5 = arith.addf %2, %4 : vector<128x128xf32>
    %c0_5 = arith.constant 0 : index
    %c0_6 = arith.constant 0 : index
    %6 = vector.load %arg5[%c0_5, %c0_6] : memref<8x128xf32, #tpu.memory_space<vmem>>, vector<8x128xf32>
    %c0_7 = arith.constant 0 : index
    %c0_8 = arith.constant 0 : index
    %7 = vector.load %arg6[%c0_7, %c0_8] : memref<8x1xf32, #tpu.memory_space<vmem>>, vector<8x1xf32>
    %8 = arith.negf %5 : vector<128x128xf32>
    %9 = math.exp %8 : vector<128x128xf32>
    %cst_9 = arith.constant 1.000000e+00 : f32
    %10 = vector.broadcast %cst_9 : f32 to vector<128x128xf32>
    %11 = arith.addf %10, %9 : vector<128x128xf32>
    %12 = arith.divf %10, %11 : vector<128x128xf32>
    %cst_10 = arith.constant dense<0.000000e+00> : vector<8x128xf32>
    %13 = tpu.matmul %6, %12, %cst_10 {dimension_numbers = #tpu.dot_dimension_numbers<[1], [0], [0], [1], [0, 0, 1, 1], [], []>} : vector<8x128xf32>, vector<128x128xf32>, vector<8x128xf32> -> vector<8x128xf32>
    %14 = vector.broadcast %7 : vector<8x1xf32> to vector<8x128xf32>
    %15 = arith.addf %13, %14 : vector<8x128xf32>
    %c0_11 = arith.constant 0 : index
    %c0_12 = arith.constant 0 : index
    %16 = vector.load %arg7[%c0_11, %c0_12] : memref<8x128xf32, #tpu.memory_space<vmem>>, vector<8x128xf32>
    tpu.vector_store %arg7[%c0_11, %c0_12], %15 {strides = array<i32>} : memref<8x128xf32, #tpu.memory_space<vmem>>, vector<8x128xf32>,
    return
  }
  func.func @transform_0(%arg0: i32, %arg1: i32) -> (i32, i32) {
    %c0_i32 = arith.constant 0 : i32
    %c0_i32_0 = arith.constant 0 : i32
    return %c0_i32, %arg1 : i32, i32
  }
  func.func @transform_1(%arg0: i32, %arg1: i32) -> (i32, i32) {
    %c0_i32 = arith.constant 0 : i32
    %c0_i32_0 = arith.constant 0 : i32
    return %arg0, %c0_i32 : i32, i32
  }
  func.func @transform_2(%arg0: i32, %arg1: i32) -> (i32, i32) {
    %c0_i32 = arith.constant 0 : i32
    %c0_i32_0 = arith.constant 0 : i32
    return %arg0, %c0_i32 : i32, i32
  }
  func.func @transform_3(%arg0: i32, %arg1: i32) -> (i32, i32) {
    %c0_i32 = arith.constant 0 : i32
    %c0_i32_0 = arith.constant 0 : i32
    return %arg0, %c0_i32 : i32, i32
  }
  func.func @transform_4(%arg0: i32, %arg1: i32) -> (i32, i32) {
    %c0_i32 = arith.constant 0 : i32
    %c0_i32_0 = arith.constant 0 : i32
    return %arg0, %c0_i32 : i32, i32
  }
  func.func @transform_5(%arg0: i32, %arg1: i32) -> (i32, i32) {
    %c0_i32 = arith.constant 0 : i32
    return %arg0, %arg1 : i32, i32
  }
}

module attributes {stable_mosaic.version = 11 : i64} {
  func.func @kernel(%arg0: i32, %arg1: i32, %arg2: memref<8x128xf32, #tpu.memory_space<vmem>>, %arg3: memref<128x8xf32, #tpu.memory_space<vmem>>, %arg4: memref<128x1xf32, #tpu.memory_space<vmem>>, %arg5: memref<8x128xf32, #tpu.memory_space<vmem>>, %arg6: memref<8x1xf32, #tpu.memory_space<vmem>>, %arg7: memref<8x128xf32, #tpu.memory_space<vmem>>) attributes {dimension_semantics = [#tpu.dimension_semantics<parallel>, #tpu.dimension_semantics<parallel>], iteration_bounds = array<i64: 1, 2>, scalar_prefetch = 0 : i64, scratch_operands = 0 : i64, tpu.core_type = #tpu.core_type<tc>, window_params = [{transform_indices = @transform_0, window_bounds = array<i64: 8, 128>}, {transform_indices = @transform_1, window_bounds = array<i64: 128, 8>}, {transform_indices = @transform_2, window_bounds = array<i64: 128, 1>}, {transform_indices = @transform_3, window_bounds = array<i64: 8, 128>}, {transform_indices = @transform_4, window_bounds = array<i64: 8, 1>}, {transform_indices = @transform_5, window_bounds = array<i64: 8, 128>}]} {
    %c0 = arith.constant 0 : index
    %c0_0 = arith.constant 0 : index
    %0 = vector.load %arg3[%c0, %c0_0] : memref<128x8xf32, #tpu.memory_space<vmem>>, vector<128x8xf32>
    %c0_1 = arith.constant 0 : index
    %c0_2 = arith.constant 0 : index
    %1 = vector.load %arg2[%c0_1, %c0_2] : memref<8x128xf32, #tpu.memory_space<vmem>>, vector<8x128xf32>
    %cst = arith.constant dense<0.000000e+00> : vector<128x128xf32>
    %2 = tpu.matmul %0, %1, %cst {dimension_numbers = #tpu.dot_dimension_numbers<[1], [0], [0], [1], [0, 0, 1, 1], [], []>} : vector<128x8xf32>, vector<8x128xf32>, vector<128x128xf32> -> vector<128x128xf32>
    %c0_3 = arith.constant 0 : index
    %c0_4 = arith.constant 0 : index
    %3 = vector.load %arg4[%c0_3, %c0_4] : memref<128x1xf32, #tpu.memory_space<vmem>>, vector<128x1xf32>
    %4 = vector.broadcast %3 : vector<128x1xf32> to vector<128x128xf32>
    %5 = arith.addf %2, %4 : vector<128x128xf32>
    %c0_5 = arith.constant 0 : index
    %c0_6 = arith.constant 0 : index
    %6 = vector.load %arg5[%c0_5, %c0_6] : memref<8x128xf32, #tpu.memory_space<vmem>>, vector<8x128xf32>
    %c0_7 = arith.constant 0 : index
    %c0_8 = arith.constant 0 : index
    %7 = vector.load %arg6[%c0_7, %c0_8] : memref<8x1xf32, #tpu.memory_space<vmem>>, vector<8x1xf32>
    %8 = arith.negf %5 : vector<128x128xf32>
    %9 = math.exp %8 : vector<128x128xf32>
    %cst_9 = arith.constant 1.000000e+00 : f32
    %10 = vector.broadcast %cst_9 : f32 to vector<128x128xf32>
    %11 = arith.addf %10, %9 : vector<128x128xf32>
    %12 = arith.divf %10, %11 : vector<128x128xf32>
    %cst_10 = arith.constant dense<0.000000e+00> : vector<8x128xf32>
    %13 = tpu.matmul %6, %12, %cst_10 {dimension_numbers = #tpu.dot_dimension_numbers<[1], [0], [0], [1], [0, 0, 1, 1], [], []>} : vector<8x128xf32>, vector<128x128xf32>, vector<8x128xf32> -> vector<8x128xf32>
    %14 = vector.broadcast %7 : vector<8x1xf32> to vector<8x128xf32>
    %15 = arith.addf %13, %14 : vector<8x128xf32>
    %c0_11 = arith.constant 0 : index
    %c0_12 = arith.constant 0 : index
    %16 = vector.load %arg7[%c0_11, %c0_12] : memref<8x128xf32, #tpu.memory_space<vmem>>, vector<8x128xf32>
    tpu.vector_store %arg7[%c0_11, %c0_12], %15 {strides = array<i32>} : memref<8x128xf32, #tpu.memory_space<vmem>>, vector<8x128xf32>,
    return
  }
  func.func @transform_0(%arg0: i32, %arg1: i32) -> (i32, i32) {
    %c0_i32 = arith.constant 0 : i32
    %c0_i32_0 = arith.constant 0 : i32
    return %c0_i32, %arg1 : i32, i32
  }
  func.func @transform_1(%arg0: i32, %arg1: i32) -> (i32, i32) {
    %c0_i32 = arith.constant 0 : i32
    %c0_i32_0 = arith.constant 0 : i32
    return %arg0, %c0_i32 : i32, i32
  }
  func.func @transform_2(%arg0: i32, %arg1: i32) -> (i32, i32) {
    %c0_i32 = arith.constant 0 : i32
    %c0_i32_0 = arith.constant 0 : i32
    return %arg0, %c0_i32 : i32, i32
  }
  func.func @transform_3(%arg0: i32, %arg1: i32) -> (i32, i32) {
    %c0_i32 = arith.constant 0 : i32
    %c0_i32_0 = arith.constant 0 : i32
    return %arg0, %c0_i32 : i32, i32
  }
  func.func @transform_4(%arg0: i32, %arg1: i32) -> (i32, i32) {
    %c0_i32 = arith.constant 0 : i32
    %c0_i32_0 = arith.constant 0 : i32
    return %arg0, %c0_i32 : i32, i32
  }
  func.func @transform_5(%arg0: i32, %arg1: i32) -> (i32, i32) {
    %c0_i32 = arith.constant 0 : i32
    return %arg0, %arg1 : i32, i32
  }
}

</mosaic_0001>

<llo_original>
// kernel: tpu_custom_call.1
$region0: #{tpu_custom_call.1}
  #allocation0 [shape = 'u32[]', space=smem, size = 0x4, offset = 0x4, fixed_abs, tag = 'smem constant byte address 0x4 - core index']
  #allocation1 [shape = 'u32[144,128]{1,0:T(1,128)}', space=vmem, size = 0x12000, scoped, tag = 'internal scratch']
  %s0 = inlined_call_operand.vmem [shape: f32[8,256], index: 0, kind: input, shape index: {}]
  %s1 = inlined_call_operand.vmem [shape: f32[128,8], index: 1, kind: input, shape index: {}]
  %s2 = inlined_call_operand.vmem [shape: f32[128,1], index: 2, kind: input, shape index: {}]
  %s3 = inlined_call_operand.vmem [shape: f32[8,128], index: 3, kind: input, shape index: {}]
  %s4 = inlined_call_operand.vmem [shape: f32[8,1], index: 4, kind: input, shape index: {}]
  %s5 = inlined_call_operand.hbm [shape: f32[8,256], index: 5, kind: output, shape index: {}]
  %s6 = sld [smem:[#allocation0]]
  $region53: #{tpu_custom_call.1} parent=0
    _
  %s8 = ssub.s32 1, %s6
  %s9 = scalar_select 0, %s8, %s6
  $region1: #{tpu_custom_call.1} parent=0
    #allocation2 [shape = 'u8[8192]{0}', space=vmem, size = 0x2000, scoped, tag = 'output window, operand 0']
    #allocation3 [shape = 's32[2]{0}', space=sflag, size = 0x8, scoped, tag = 'scoped memory for tpu_custom_call.1']
    %10 = vsyncpa [#allocation3], 0
    %s11 = scalar_lea.sflag [#allocation3], 1
    %12 = vsyncpa %s11, 0
    loop: start=0, step=1, limit=4
    $region2: #{tpu_custom_call.1} parent=1 // loop_pre_header
      _
    $region3: #{tpu_custom_call.1} parent=1 // loop_header
      %s14 = sphi 0, %s18
      %p15 = scmp.ge.s32.totalorder %s14, 4
      %s21 = sphi 0, %s33
      %s22 = sphi 0, %s29
      %s23 = sphi 0, %s21
      %s24 = sphi 0, %s22
      %s25 = sphi 0, %s23
      %s26 = sphi 0, %s24
      %s36 = sphi 0, %s38
      %s39 = sphi 0, %s36
      %s40 = sphi 0, %s39
      %s56 = sphi 0, %s40
      %s62 = sphi 0, %s64
      %s65 = sphi 0, %s62
      %s66 = sphi 0, %s65
      %s82 = sphi 0, %s66
      %s88 = sphi 0, %s90
      %s91 = sphi 0, %s88
      %s92 = sphi 0, %s91
      %s108 = sphi 0, %s92
      %s114 = sphi 0, %s116
      %s117 = sphi 0, %s114
      %s118 = sphi 0, %s117
      %s134 = sphi 0, %s118
      %s140 = sphi 0, %s142
      %s143 = sphi 0, %s140
      %s144 = sphi 0, %s143
      %s160 = sphi 0, %s144
      %s168 = sphi 0, %s170
      %s171 = sphi 0, %s168
      %s172 = sphi 0, %s171
      %s188 = sphi 0, %s172
    $region4: #{tpu_custom_call.1} parent=1 // loop_header_branch
      %17 = sbr.rel (%p15) target = $region8
    $region5: #{tpu_custom_call.1} parent=1 // loop_body
      %s19 = ssub.s32 %s14, 1
      %s20 = ssub.s32 %s14, 2
      %s27 = sadd.s32 1, %s22
      %p28 = scmp.ge.s32.totalorder %s27, 2
      %s29 = scalar_select %p28, 0, %s27
      %s30 = sadd.s32 1, %s21
      %s31 = scalar_select %p28, %s30, %s21
      %p32 = scmp.ge.s32.totalorder %s31, 1
      %s33 = scalar_select %p32, 0, %s31
      %s34 = ssub.s32 %s22, %s29
      %p35 = scmp.eq.s32.totalorder %s34, 0
      %s37 = sadd.s32 %s36, 1
      %s38 = scalar_select %p35, %s36, %s37
      %p41 = pneg %p35
      %p42 = scmp.eq.s32.totalorder %s14, 1
      %p43 = por %p41, %p42
      %p44 = scmp.ne.s32.totalorder %s36, %s39
      %p45 = scmp.eq.s32.totalorder %s14, 0
      %p46 = por %p44, %p45
      %p47 = scmp.ne.s32.totalorder %s36, %s39
      %p48 = scmp.eq.s32.totalorder %s19, 1
      %p49 = por %p47, %p48
      %p50 = scmp.ne.s32.totalorder %s39, %s40
      %p51 = scmp.eq.s32.totalorder %s19, 0
      %p52 = por %p50, %p51
      %p53 = scmp.ne.s32.totalorder %s39, %s40
      %p54 = scmp.eq.s32.totalorder %s20, 1
      %p55 = por %p53, %p54
      %p57 = scmp.ne.s32.totalorder %s40, %s56
      %p58 = scmp.eq.s32.totalorder %s20, 0
      %p59 = por %p57, %p58
      %s60 = ssub.s32 %s21, %s33
      %p61 = scmp.eq.s32.totalorder %s60, 0
      %s63 = sadd.s32 %s62, 1
      %s64 = scalar_select %p61, %s62, %s63
      %p67 = pneg %p61
      %p68 = scmp.eq.s32.totalorder %s14, 1
      %p69 = por %p67, %p68
      %p70 = scmp.ne.s32.totalorder %s62, %s65
      %p71 = scmp.eq.s32.totalorder %s14, 0
      %p72 = por %p70, %p71
      %p73 = scmp.ne.s32.totalorder %s62, %s65
      %p74 = scmp.eq.s32.totalorder %s19, 1
      %p75 = por %p73, %p74
      %p76 = scmp.ne.s32.totalorder %s65, %s66
      %p77 = scmp.eq.s32.totalorder %s19, 0
      %p78 = por %p76, %p77
      %p79 = scmp.ne.s32.totalorder %s65, %s66
      %p80 = scmp.eq.s32.totalorder %s20, 1
      %p81 = por %p79, %p80
      %p83 = scmp.ne.s32.totalorder %s66, %s82
      %p84 = scmp.eq.s32.totalorder %s20, 0
      %p85 = por %p83, %p84
      %s86 = ssub.s32 %s21, %s33
      %p87 = scmp.eq.s32.totalorder %s86, 0
      %s89 = sadd.s32 %s88, 1
      %s90 = scalar_select %p87, %s88, %s89
      %p93 = pneg %p87
      %p94 = scmp.eq.s32.totalorder %s14, 1
      %p95 = por %p93, %p94
      %p96 = scmp.ne.s32.totalorder %s88, %s91
      %p97 = scmp.eq.s32.totalorder %s14, 0
      %p98 = por %p96, %p97
      %p99 = scmp.ne.s32.totalorder %s88, %s91
      %p100 = scmp.eq.s32.totalorder %s19, 1
      %p101 = por %p99, %p100
      %p102 = scmp.ne.s32.totalorder %s91, %s92
      %p103 = scmp.eq.s32.totalorder %s19, 0
      %p104 = por %p102, %p103
      %p105 = scmp.ne.s32.totalorder %s91, %s92
      %p106 = scmp.eq.s32.totalorder %s20, 1
      %p107 = por %p105, %p106
      %p109 = scmp.ne.s32.totalorder %s92, %s108
      %p110 = scmp.eq.s32.totalorder %s20, 0
      %p111 = por %p109, %p110
      %s112 = ssub.s32 %s21, %s33
      %p113 = scmp.eq.s32.totalorder %s112, 0
      %s115 = sadd.s32 %s114, 1
      %s116 = scalar_select %p113, %s114, %s115
      %p119 = pneg %p113
      %p120 = scmp.eq.s32.totalorder %s14, 1
      %p121 = por %p119, %p120
      %p122 = scmp.ne.s32.totalorder %s114, %s117
      %p123 = scmp.eq.s32.totalorder %s14, 0
      %p124 = por %p122, %p123
      %p125 = scmp.ne.s32.totalorder %s114, %s117
      %p126 = scmp.eq.s32.totalorder %s19, 1
      %p127 = por %p125, %p126
      %p128 = scmp.ne.s32.totalorder %s117, %s118
      %p129 = scmp.eq.s32.totalorder %s19, 0
      %p130 = por %p128, %p129
      %p131 = scmp.ne.s32.totalorder %s117, %s118
      %p132 = scmp.eq.s32.totalorder %s20, 1
      %p133 = por %p131, %p132
      %p135 = scmp.ne.s32.totalorder %s118, %s134
      %p136 = scmp.eq.s32.totalorder %s20, 0
      %p137 = por %p135, %p136
      %s138 = ssub.s32 %s21, %s33
      %p139 = scmp.eq.s32.totalorder %s138, 0
      %s141 = sadd.s32 %s140, 1
      %s142 = scalar_select %p139, %s140, %s141
      %p145 = pneg %p139
      %p146 = scmp.eq.s32.totalorder %s14, 1
      %p147 = por %p145, %p146
      %p148 = scmp.ne.s32.totalorder %s140, %s143
      %p149 = scmp.eq.s32.totalorder %s14, 0
      %p150 = por %p148, %p149
      %p151 = scmp.ne.s32.totalorder %s140, %s143
      %p152 = scmp.eq.s32.totalorder %s19, 1
      %p153 = por %p151, %p152
      %p154 = scmp.ne.s32.totalorder %s143, %s144
      %p155 = scmp.eq.s32.totalorder %s19, 0
      %p156 = por %p154, %p155
      %p157 = scmp.ne.s32.totalorder %s143, %s144
      %p158 = scmp.eq.s32.totalorder %s20, 1
      %p159 = por %p157, %p158
      %p161 = scmp.ne.s32.totalorder %s144, %s160
      %p162 = scmp.eq.s32.totalorder %s20, 0
      %p163 = por %p161, %p162
      %s164 = ssub.s32 %s21, %s33
      %s165 = ssub.s32 %s22, %s29
      %s166 = sor.u32 %s164, %s165
      %p167 = scmp.eq.s32.totalorder %s166, 0
      %s169 = sadd.s32 %s168, 1
      %s170 = scalar_select %p167, %s168, %s169
      %p173 = pneg %p167
      %p174 = scmp.eq.s32.totalorder %s14, 1
      %p175 = por %p173, %p174
      %p176 = scmp.ne.s32.totalorder %s168, %s171
      %p177 = scmp.eq.s32.totalorder %s14, 0
      %p178 = por %p176, %p177
      %p179 = scmp.ne.s32.totalorder %s168, %s171
      %p180 = scmp.eq.s32.totalorder %s19, 1
      %p181 = por %p179, %p180
      %p182 = scmp.ne.s32.totalorder %s171, %s172
      %p183 = scmp.eq.s32.totalorder %s19, 0
      %p184 = por %p182, %p183
      %p185 = scmp.ne.s32.totalorder %s171, %s172
      %p186 = scmp.eq.s32.totalorder %s20, 1
      %p187 = por %p185, %p186
      %p189 = scmp.ne.s32.totalorder %s172, %s188
      %p190 = scmp.eq.s32.totalorder %s20, 0
      %p191 = por %p189, %p190
      %p192 = scmp.le.s32.totalorder 1, %s14
      %p193 = scmp.lt.s32.totalorder %s14, 3
      %p194 = pnand %p192, %p193
      %p195 = pneg %p194
      // Predicated region
      $region9: #{tpu_custom_call.1} parent=5 // pred_check
        _
      $region10: #{tpu_custom_call.1} parent=5 // pred_check_branch
        %197 = sbr.rel (%p194) target = $region12
      $region11: #{tpu_custom_call.1} parent=5 // pred_region
        %s198 = ssub.s32 %s14, 1
        // Predicated region
        $region13: #{tpu_custom_call.1} parent=11 // pred_check
          %p199 = pneg %p78
        $region14: #{tpu_custom_call.1} parent=11 // pred_check_branch
          %201 = sbr.rel (%p199) target = $region16
        $region15: #{tpu_custom_call.1} parent=11 // pred_region
          %s202 = smul.u32 16, %s23
          %p203 = scmp.lt.s32.totalorder %s202, 15
          %s204 = scalar_select %p203, %s202, 15
          %s205 = smul.addr %s204, 8
          %s206 = scalar_lea.vmem %s1, %s205
          %s207 = smul.u32 16, %s23
        $region16: #{tpu_custom_call.1} parent=11 // pred_fallthru
          _
        // Predicated region
        $region17: #{tpu_custom_call.1} parent=11 // pred_check
          %p208 = pneg %p104
        $region18: #{tpu_custom_call.1} parent=11 // pred_check_branch
          %210 = sbr.rel (%p208) target = $region20
        $region19: #{tpu_custom_call.1} parent=11 // pred_region
          %s211 = smul.u32 16, %s23
          %p212 = scmp.lt.s32.totalorder %s211, 15
          %s213 = scalar_select %p212, %s211, 15
          %s214 = smul.addr %s213, 8
          %s215 = scalar_lea.vmem %s2, %s214
          %s216 = smul.u32 16, %s23
        $region20: #{tpu_custom_call.1} parent=11 // pred_fallthru
          _
        // Predicated region
        $region21: #{tpu_custom_call.1} parent=11 // pred_check
          %p217 = pneg %p130
        $region22: #{tpu_custom_call.1} parent=11 // pred_check_branch
          %219 = sbr.rel (%p217) target = $region24
        $region23: #{tpu_custom_call.1} parent=11 // pred_region
          %p220 = scmp.lt.s32.totalorder %s23, 0
          %s221 = scalar_select %p220, %s23, 0
          %s222 = smul.addr %s221, 8
          %s223 = scalar_lea.vmem %s3, %s222
        $region24: #{tpu_custom_call.1} parent=11 // pred_fallthru
          _
        // Predicated region
        $region25: #{tpu_custom_call.1} parent=11 // pred_check
          %p224 = pneg %p156
        $region26: #{tpu_custom_call.1} parent=11 // pred_check_branch
          %226 = sbr.rel (%p224) target = $region28
        $region27: #{tpu_custom_call.1} parent=11 // pred_region
          %p227 = scmp.lt.s32.totalorder %s23, 0
          %s228 = scalar_select %p227, %s23, 0
          %s229 = smul.addr %s228, 8
          %s230 = scalar_lea.vmem %s4, %s229
        $region28: #{tpu_custom_call.1} parent=11 // pred_fallthru
          _
      $region12: #{tpu_custom_call.1} parent=5 // pred_fallthru
        _
      %p231 = scmp.lt.s32.totalorder %s14, 2
      // Predicated region
      $region29: #{tpu_custom_call.1} parent=5 // pred_check
        %p232 = pneg %p231
      $region30: #{tpu_custom_call.1} parent=5 // pred_check_branch
        %234 = sbr.rel (%p232) target = $region32
      $region31: #{tpu_custom_call.1} parent=5 // pred_region
        // Predicated region
        $region33: #{tpu_custom_call.1} parent=31 // pred_check
          %p235 = pneg %p46
        $region34: #{tpu_custom_call.1} parent=31 // pred_check_branch
          %237 = sbr.rel (%p235) target = $region36
        $region35: #{tpu_custom_call.1} parent=31 // pred_region
          %p238 = scmp.lt.s32.totalorder %s22, 1
          %s239 = scalar_select %p238, %s22, 1
          %s240 = smul.addr %s239, 8
          %s241 = scalar_lea.vmem %s0, %s240
        $region36: #{tpu_custom_call.1} parent=31 // pred_fallthru
          _
      $region32: #{tpu_custom_call.1} parent=5 // pred_fallthru
        _
      %p242 = scmp.le.s32.totalorder 1, %s14
      %p243 = scmp.lt.s32.totalorder %s14, 3
      %p244 = pnand %p242, %p243
      %p245 = pneg %p244
      // Predicated region
      $region37: #{tpu_custom_call.1} parent=5 // pred_check
        _
      $region38: #{tpu_custom_call.1} parent=5 // pred_check_branch
        %247 = sbr.rel (%p244) target = $region40
      $region39: #{tpu_custom_call.1} parent=5 // pred_region
        %s248 = ssub.s32 %s14, 1
        %p249 = scmp.lt.s32.totalorder %s24, 1
        %s250 = scalar_select %p249, %s24, 1
        %s251 = smul.addr %s250, 8
        %s252 = scalar_lea.vmem %s0, %s251
        %p253 = pneg %p52
        %p254 = pneg %p49
        %s255 = smul.u32 16, %s23
        %p256 = scmp.lt.s32.totalorder %s255, 15
        %s257 = scalar_select %p256, %s255, 15
        %s258 = smul.addr %s257, 8
        %s259 = scalar_lea.vmem %s1, %s258
        %p260 = pneg %p78
        %p261 = pneg %p75
        %s262 = smul.u32 16, %s23
        %p263 = scmp.lt.s32.totalorder %s262, 15
        %s264 = scalar_select %p263, %s262, 15
        %s265 = smul.addr %s264, 8
        %s266 = scalar_lea.vmem %s2, %s265
        %p267 = pneg %p104
        %p268 = pneg %p101
        %p269 = scmp.lt.s32.totalorder %s23, 0
        %s270 = scalar_select %p269, %s23, 0
        %s271 = smul.addr %s270, 8
        %s272 = scalar_lea.vmem %s3, %s271
        %p273 = pneg %p130
        %p274 = pneg %p127
        %p275 = scmp.lt.s32.totalorder %s23, 0
        %s276 = scalar_select %p275, %s23, 0
        %s277 = smul.addr %s276, 8
        %s278 = scalar_lea.vmem %s4, %s277
        %p279 = pneg %p156
        %p280 = pneg %p153
        %p281 = pneg %p184
        %p282 = pneg %p181
        %s283 = sand.u32 %s171, 1
        %s284 = scalar_lea.sflag [#allocation3], %s283
        %s285 = sand.u32 %s171, 1
        %s286 = smul.addr %s285, 8
        %s287 = scalar_lea.vmem [#allocation2], %s286
        %p288 = scmp.lt.s32.totalorder %s24, 1
        %s289 = scalar_select %p288, %s24, 1
        %s290 = smul.addr %s289, 8
        %s291 = scalar_lea.vmem %s0, %s290
        %s292 = smul.u32 16, %s23
        %p293 = scmp.lt.s32.totalorder %s292, 15
        %s294 = scalar_select %p293, %s292, 15
        %s295 = smul.addr %s294, 8
        %s296 = scalar_lea.vmem %s1, %s295
        %s297 = smul.u32 16, %s23
        %s298 = smul.u32 16, %s23
        %p299 = scmp.lt.s32.totalorder %s298, 15
        %s300 = scalar_select %p299, %s298, 15
        %s301 = smul.addr %s300, 8
        %s302 = scalar_lea.vmem %s2, %s301
        %s303 = smul.u32 16, %s23
        %p304 = scmp.lt.s32.totalorder %s23, 0
        %s305 = scalar_select %p304, %s23, 0
        %s306 = smul.addr %s305, 8
        %s307 = scalar_lea.vmem %s3, %s306
        %p308 = scmp.lt.s32.totalorder %s23, 0
        %s309 = scalar_select %p308, %s23, 0
        %s310 = smul.addr %s309, 8
        %s311 = scalar_lea.vmem %s4, %s310
        %v312 = vld [vmem:[%s296] sm:$0xff]
        %v313 = vld [vmem:[%s296 + $0x8] sm:$0xff]
        %v314 = vld [vmem:[%s296 + $0x10] sm:$0xff]
        %v315 = vld [vmem:[%s296 + $0x18] sm:$0xff]
        %v316 = vld [vmem:[%s296 + $0x20] sm:$0xff]
        %v317 = vld [vmem:[%s296 + $0x28] sm:$0xff]
        %v318 = vld [vmem:[%s296 + $0x30] sm:$0xff]
        %v319 = vld [vmem:[%s296 + $0x38] sm:$0xff]
        %v320 = vld [vmem:[%s296 + $0x40] sm:$0xff]
        %v321 = vld [vmem:[%s296 + $0x48] sm:$0xff]
        %v322 = vld [vmem:[%s296 + $0x50] sm:$0xff]
        %v323 = vld [vmem:[%s296 + $0x58] sm:$0xff]
        %v324 = vld [vmem:[%s296 + $0x60] sm:$0xff]
        %v325 = vld [vmem:[%s296 + $0x68] sm:$0xff]
        %v326 = vld [vmem:[%s296 + $0x70] sm:$0xff]
        %v327 = vld [vmem:[%s296 + $0x78] sm:$0xff]
        %v328 = vld [vmem:[%s291] sm:$0xff]
        %v329 = vld [vmem:[%s302] sm:$0xff]
        %v330 = vld [vmem:[%s302 + $0x8] sm:$0xff]
        %v331 = vld [vmem:[%s302 + $0x10] sm:$0xff]
        %v332 = vld [vmem:[%s302 + $0x18] sm:$0xff]
        %v333 = vld [vmem:[%s302 + $0x20] sm:$0xff]
        %v334 = vld [vmem:[%s302 + $0x28] sm:$0xff]
        %v335 = vld [vmem:[%s302 + $0x30] sm:$0xff]
        %v336 = vld [vmem:[%s302 + $0x38] sm:$0xff]
        %v337 = vld [vmem:[%s302 + $0x40] sm:$0xff]
        %v338 = vld [vmem:[%s302 + $0x48] sm:$0xff]
        %v339 = vld [vmem:[%s302 + $0x50] sm:$0xff]
        %v340 = vld [vmem:[%s302 + $0x58] sm:$0xff]
        %v341 = vld [vmem:[%s302 + $0x60] sm:$0xff]
        %v342 = vld [vmem:[%s302 + $0x68] sm:$0xff]
        %v343 = vld [vmem:[%s302 + $0x70] sm:$0xff]
        %v344 = vld [vmem:[%s302 + $0x78] sm:$0xff]
        %346 = vset.pattern.permute.xlu0 0
        %347 = vperm.xlu0 %346, %v329
        %v348 = vpop.permute.xlu0 %347
        %351 = vset.pattern.permute.xlu0 0
        %352 = vperm.xlu0 %351, %v330
        %v353 = vpop.permute.xlu0 %352
        %356 = vset.pattern.permute.xlu0 0
        %357 = vperm.xlu0 %356, %v331
        %v358 = vpop.permute.xlu0 %357
        %361 = vset.pattern.permute.xlu0 0
        %362 = vperm.xlu0 %361, %v332
        %v363 = vpop.permute.xlu0 %362
        %366 = vset.pattern.permute.xlu0 0
        %367 = vperm.xlu0 %366, %v333
        %v368 = vpop.permute.xlu0 %367
        %371 = vset.pattern.permute.xlu0 0
        %372 = vperm.xlu0 %371, %v334
        %v373 = vpop.permute.xlu0 %372
        %376 = vset.pattern.permute.xlu0 0
        %377 = vperm.xlu0 %376, %v335
        %v378 = vpop.permute.xlu0 %377
        %381 = vset.pattern.permute.xlu0 0
        %382 = vperm.xlu0 %381, %v336
        %v383 = vpop.permute.xlu0 %382
        %386 = vset.pattern.permute.xlu0 0
        %387 = vperm.xlu0 %386, %v337
        %v388 = vpop.permute.xlu0 %387
        %391 = vset.pattern.permute.xlu0 0
        %392 = vperm.xlu0 %391, %v338
        %v393 = vpop.permute.xlu0 %392
        %396 = vset.pattern.permute.xlu0 0
        %397 = vperm.xlu0 %396, %v339
        %v398 = vpop.permute.xlu0 %397
        %401 = vset.pattern.permute.xlu0 0
        %402 = vperm.xlu0 %401, %v340
        %v403 = vpop.permute.xlu0 %402
        %406 = vset.pattern.permute.xlu0 0
        %407 = vperm.xlu0 %406, %v341
        %v408 = vpop.permute.xlu0 %407
        %411 = vset.pattern.permute.xlu0 0
        %412 = vperm.xlu0 %411, %v342
        %v413 = vpop.permute.xlu0 %412
        %416 = vset.pattern.permute.xlu0 0
        %417 = vperm.xlu0 %416, %v343
        %v418 = vpop.permute.xlu0 %417
        %421 = vset.pattern.permute.xlu0 0
        %422 = vperm.xlu0 %421, %v344
        %v423 = vpop.permute.xlu0 %422
        %vm425 = vcmask 64512
        %v427 = vsel %vm425, %v312, 0
        %v430 = vsel %vm425, %v313, 0
        %v433 = vsel %vm425, %v314, 0
        %v436 = vsel %vm425, %v315, 0
        %v439 = vsel %vm425, %v316, 0
        %v442 = vsel %vm425, %v317, 0
        %v445 = vsel %vm425, %v318, 0
        %v448 = vsel %vm425, %v319, 0
        %v451 = vsel %vm425, %v320, 0
        %v454 = vsel %vm425, %v321, 0
        %v457 = vsel %vm425, %v322, 0
        %v460 = vsel %vm425, %v323, 0
        %v463 = vsel %vm425, %v324, 0
        %v466 = vsel %vm425, %v325, 0
        %v469 = vsel %vm425, %v326, 0
        %v472 = vsel %vm425, %v327, 0
        %474 = vmatprep.subr.mxu0 0.0
        %475 = vmatpush1.msra.mxu0 %v328
        %476 = vmatprep.subr.mxu0 0.0
        %477 = vmatpush1.msra.mxu0 0.0
        %478 = vmatprep.subr.mxu0 0.0
        %479 = vmatpush1.msra.mxu0 0.0
        %480 = vmatprep.subr.mxu0 0.0
        %481 = vmatpush1.msra.mxu0 0.0
        %482 = vmatprep.subr.mxu0 0.0
        %483 = vmatpush1.msra.mxu0 0.0
        %484 = vmatprep.subr.mxu0 0.0
        %485 = vmatpush1.msra.mxu0 0.0
        %486 = vmatprep.subr.mxu0 0.0
        %487 = vmatpush1.msra.mxu0 0.0
        %488 = vmatprep.subr.mxu0 0.0
        %489 = vmatpush1.msra.mxu0 0.0
        %490 = vmatprep.subr.mxu0 0.0
        %491 = vmatpush1.msra.mxu0 0.0
        %492 = vmatprep.subr.mxu0 0.0
        %493 = vmatpush1.msra.mxu0 0.0
        %494 = vmatprep.subr.mxu0 0.0
        %495 = vmatpush1.msra.mxu0 0.0
        %496 = vmatprep.subr.mxu0 0.0
        %497 = vmatpush1.msra.mxu0 0.0
        %498 = vmatprep.subr.mxu0 0.0
        %499 = vmatpush1.msra.mxu0 0.0
        %500 = vmatprep.subr.mxu0 0.0
        %501 = vmatpush1.msra.mxu0 0.0
        %502 = vmatprep.subr.mxu0 0.0
        %503 = vmatpush1.msra.mxu0 0.0
        %504 = vmatprep.subr.mxu0 0.0
        %505 = vmatpush1.msra.mxu0 0.0
        %506 = vmatprep.subr.mxu0 0.0
        %507 = vmatpush1.msra.mxu0 0.0
        %508 = vmatprep.subr.mxu0 0.0
        %509 = vmatpush1.msra.mxu0 0.0
        %510 = vmatprep.subr.mxu0 0.0
        %511 = vmatpush1.msra.mxu0 0.0
        %512 = vmatprep.subr.mxu0 0.0
        %513 = vmatpush1.msra.mxu0 0.0
        %514 = vmatprep.subr.mxu0 0.0
        %515 = vmatpush1.msra.mxu0 0.0
        %516 = vmatprep.subr.mxu0 0.0
        %517 = vmatpush1.msra.mxu0 0.0
        %518 = vmatprep.subr.mxu0 0.0
        %519 = vmatpush1.msra.mxu0 0.0
        %520 = vmatprep.subr.mxu0 0.0
        %521 = vmatpush1.msra.mxu0 0.0
        %522 = vmatprep.subr.mxu0 0.0
        %523 = vmatpush1.msra.mxu0 0.0
        %524 = vmatprep.subr.mxu0 0.0
        %525 = vmatpush1.msra.mxu0 0.0
        %526 = vmatprep.subr.mxu0 0.0
        %527 = vmatpush1.msra.mxu0 0.0
        %528 = vmatprep.subr.mxu0 0.0
        %529 = vmatpush1.msra.mxu0 0.0
        %530 = vmatprep.subr.mxu0 0.0
        %531 = vmatpush1.msra.mxu0 0.0
        %532 = vmatprep.subr.mxu0 0.0
        %533 = vmatpush1.msra.mxu0 0.0
        %534 = vmatprep.subr.mxu0 0.0
        %535 = vmatpush1.msra.mxu0 0.0
        %536 = vmatprep.subr.mxu0 0.0
        %537 = vmatpush1.msra.mxu0 0.0
        %538 = vmatprep.mubr.f32.mxu0 0.0
        %539 = vmatmul.mubr.f32.gmra.mrb[0].mxu0 %v427
        %v540 = vpop.f32.mrb[0].mxu0
        %v541 = vadd.f32 %v348, %v540
        %v542 = vpop.f32.mrb[0].mxu0
        %543 = vmatprep.mubr.f32.mxu0 0.0
        %544 = vmatmul.mubr.f32.gmra.mrb[0].mxu0 %v430
        %v545 = vpop.f32.mrb[0].mxu0
        %v546 = vadd.f32 %v353, %v545
        %v547 = vpop.f32.mrb[0].mxu0
        %548 = vmatprep.mubr.f32.mxu0 0.0
        %549 = vmatmul.mubr.f32.gmra.mrb[0].mxu0 %v433
        %v550 = vpop.f32.mrb[0].mxu0
        %v551 = vadd.f32 %v358, %v550
        %v552 = vpop.f32.mrb[0].mxu0
        %553 = vmatprep.mubr.f32.mxu0 0.0
        %554 = vmatmul.mubr.f32.gmra.mrb[0].mxu0 %v436
        %v555 = vpop.f32.mrb[0].mxu0
        %v556 = vadd.f32 %v363, %v555
        %v557 = vpop.f32.mrb[0].mxu0
        %558 = vmatprep.mubr.f32.mxu0 0.0
        %559 = vmatmul.mubr.f32.gmra.mrb[0].mxu0 %v439
        %v560 = vpop.f32.mrb[0].mxu0
        %v561 = vadd.f32 %v368, %v560
        %v562 = vpop.f32.mrb[0].mxu0
        %563 = vmatprep.mubr.f32.mxu0 0.0
        %564 = vmatmul.mubr.f32.gmra.mrb[0].mxu0 %v442
        %v565 = vpop.f32.mrb[0].mxu0
        %v566 = vadd.f32 %v373, %v565
        %v567 = vpop.f32.mrb[0].mxu0
        %568 = vmatprep.mubr.f32.mxu0 0.0
        %569 = vmatmul.mubr.f32.gmra.mrb[0].mxu0 %v445
        %v570 = vpop.f32.mrb[0].mxu0
        %v571 = vadd.f32 %v378, %v570
        %v572 = vpop.f32.mrb[0].mxu0
        %573 = vmatprep.mubr.f32.mxu0 0.0
        %574 = vmatmul.mubr.f32.gmra.mrb[0].mxu0 %v448
        %v575 = vpop.f32.mrb[0].mxu0
        %v576 = vadd.f32 %v383, %v575
        %v577 = vpop.f32.mrb[0].mxu0
        %578 = vmatprep.mubr.f32.mxu0 0.0
        %579 = vmatmul.mubr.f32.gmra.mrb[0].mxu0 %v451
        %v580 = vpop.f32.mrb[0].mxu0
        %v581 = vadd.f32 %v388, %v580
        %v582 = vpop.f32.mrb[0].mxu0
        %583 = vmatprep.mubr.f32.mxu0 0.0
        %584 = vmatmul.mubr.f32.gmra.mrb[0].mxu0 %v454
        %v585 = vpop.f32.mrb[0].mxu0
        %v586 = vadd.f32 %v393, %v585
        %v587 = vpop.f32.mrb[0].mxu0
        %588 = vmatprep.mubr.f32.mxu0 0.0
        %589 = vmatmul.mubr.f32.gmra.mrb[0].mxu0 %v457
        %v590 = vpop.f32.mrb[0].mxu0
        %v591 = vadd.f32 %v398, %v590
        %v592 = vpop.f32.mrb[0].mxu0
        %593 = vmatprep.mubr.f32.mxu0 0.0
        %594 = vmatmul.mubr.f32.gmra.mrb[0].mxu0 %v460
        %v595 = vpop.f32.mrb[0].mxu0
        %v596 = vadd.f32 %v403, %v595
        %v597 = vpop.f32.mrb[0].mxu0
        %598 = vmatprep.mubr.f32.mxu0 0.0
        %599 = vmatmul.mubr.f32.gmra.mrb[0].mxu0 %v463
        %v600 = vpop.f32.mrb[0].mxu0
        %v601 = vadd.f32 %v408, %v600
        %v602 = vpop.f32.mrb[0].mxu0
        %603 = vmatprep.mubr.f32.mxu0 0.0
        %604 = vmatmul.mubr.f32.gmra.mrb[0].mxu0 %v466
        %v605 = vpop.f32.mrb[0].mxu0
        %v606 = vadd.f32 %v413, %v605
        %v607 = vpop.f32.mrb[0].mxu0
        %608 = vmatprep.mubr.f32.mxu0 0.0
        %609 = vmatmul.mubr.f32.gmra.mrb[0].mxu0 %v469
        %v610 = vpop.f32.mrb[0].mxu0
        %v611 = vadd.f32 %v418, %v610
        %v612 = vpop.f32.mrb[0].mxu0
        %613 = vmatprep.mubr.f32.mxu0 0.0
        %614 = vmatmul.mubr.f32.gmra.mrb[0].mxu0 %v472
        %v615 = vpop.f32.mrb[0].mxu0
        %v616 = vadd.f32 %v423, %v615
        %v617 = vpop.f32.mrb[0].mxu0
        %618 = vdwg.mxu0
        %v619 = vld [vmem:[%s307] sm:$0xff]
        %v620 = vld [vmem:[%s311] sm:$0xff]
        %v621 = vxor.u32 %v541, 2147483648
        %v622 = vxor.u32 %v546, 2147483648
        %v623 = vxor.u32 %v551, 2147483648
        %v624 = vxor.u32 %v556, 2147483648
        %v625 = vxor.u32 %v561, 2147483648
        %v626 = vxor.u32 %v566, 2147483648
        %v627 = vxor.u32 %v571, 2147483648
        %v628 = vxor.u32 %v576, 2147483648
        %v629 = vxor.u32 %v581, 2147483648
        %v630 = vxor.u32 %v586, 2147483648
        %v631 = vxor.u32 %v591, 2147483648
        %v632 = vxor.u32 %v596, 2147483648
        %v633 = vxor.u32 %v601, 2147483648
        %v634 = vxor.u32 %v606, 2147483648
        %v635 = vxor.u32 %v611, 2147483648
        %v636 = vxor.u32 %v616, 2147483648
        %v637 = vmul.f32 %v621, 1.442695
        %v638 = vpow.pop %v637
        %v639 = vmul.f32 %v622, 1.442695
        %v640 = vpow.pop %v639
        %v641 = vmul.f32 %v623, 1.442695
        %v642 = vpow.pop %v641
        %v643 = vmul.f32 %v624, 1.442695
        %v644 = vpow.pop %v643
        %v645 = vmul.f32 %v625, 1.442695
        %v646 = vpow.pop %v645
        %v647 = vmul.f32 %v626, 1.442695
        %v648 = vpow.pop %v647
        %v649 = vmul.f32 %v627, 1.442695
        %v650 = vpow.pop %v649
        %v651 = vmul.f32 %v628, 1.442695
        %v652 = vpow.pop %v651
        %v653 = vmul.f32 %v629, 1.442695
        %v654 = vpow.pop %v653
        %v655 = vmul.f32 %v630, 1.442695
        %v656 = vpow.pop %v655
        %v657 = vmul.f32 %v631, 1.442695
        %v658 = vpow.pop %v657
        %v659 = vmul.f32 %v632, 1.442695
        %v660 = vpow.pop %v659
        %v661 = vmul.f32 %v633, 1.442695
        %v662 = vpow.pop %v661
        %v663 = vmul.f32 %v634, 1.442695
        %v664 = vpow.pop %v663
        %v665 = vmul.f32 %v635, 1.442695
        %v666 = vpow.pop %v665
        %v667 = vmul.f32 %v636, 1.442695
        %v668 = vpow.pop %v667
        %v669 = vadd.f32 %v638, 1.0
        %v670 = vadd.f32 %v640, 1.0
        %v671 = vadd.f32 %v642, 1.0
        %v672 = vadd.f32 %v644, 1.0
        %v673 = vadd.f32 %v646, 1.0
        %v674 = vadd.f32 %v648, 1.0
        %v675 = vadd.f32 %v650, 1.0
        %v676 = vadd.f32 %v652, 1.0
        %v677 = vadd.f32 %v654, 1.0
        %v678 = vadd.f32 %v656, 1.0
        %v679 = vadd.f32 %v658, 1.0
        %v680 = vadd.f32 %v660, 1.0
        %v681 = vadd.f32 %v662, 1.0
        %v682 = vadd.f32 %v664, 1.0
        %v683 = vadd.f32 %v666, 1.0
        %v684 = vadd.f32 %v668, 1.0
        %v685 = vrcp.pop %v669
        %v686 = vmul.f32 1.0, %v685
        %v687 = vrcp.pop %v670
        %v688 = vmul.f32 1.0, %v687
        %v689 = vrcp.pop %v671
        %v690 = vmul.f32 1.0, %v689
        %v691 = vrcp.pop %v672
        %v692 = vmul.f32 1.0, %v691
        %v693 = vrcp.pop %v673
        %v694 = vmul.f32 1.0, %v693
        %v695 = vrcp.pop %v674
        %v696 = vmul.f32 1.0, %v695
        %v697 = vrcp.pop %v675
        %v698 = vmul.f32 1.0, %v697
        %v699 = vrcp.pop %v676
        %v700 = vmul.f32 1.0, %v699
        %v701 = vrcp.pop %v677
        %v702 = vmul.f32 1.0, %v701
        %v703 = vrcp.pop %v678
        %v704 = vmul.f32 1.0, %v703
        %v705 = vrcp.pop %v679
        %v706 = vmul.f32 1.0, %v705
        %v707 = vrcp.pop %v680
        %v708 = vmul.f32 1.0, %v707
        %v709 = vrcp.pop %v681
        %v710 = vmul.f32 1.0, %v709
        %v711 = vrcp.pop %v682
        %v712 = vmul.f32 1.0, %v711
        %v713 = vrcp.pop %v683
        %v714 = vmul.f32 1.0, %v713
        %v715 = vrcp.pop %v684
        %v716 = vmul.f32 1.0, %v715
        %718 = vset.pattern.permute.xlu0 0
        %719 = vperm.xlu0 %718, %v620
        %v720 = vpop.permute.xlu0 %719
        %722 = vmatprep.subr.mxu0 0.0
        %723 = vmatpush1.msra.mxu0 %v686
        %724 = vmatprep.subr.mxu0 0.0
        %725 = vmatpush1.msra.mxu0 %v688
        %726 = vmatprep.subr.mxu0 0.0
        %727 = vmatpush1.msra.mxu0 %v690
        %728 = vmatprep.subr.mxu0 0.0
        %729 = vmatpush1.msra.mxu0 %v692
        %730 = vmatprep.subr.mxu0 0.0
        %731 = vmatpush1.msra.mxu0 %v694
        %732 = vmatprep.subr.mxu0 0.0
        %733 = vmatpush1.msra.mxu0 %v696
        %734 = vmatprep.subr.mxu0 0.0
        %735 = vmatpush1.msra.mxu0 %v698
        %736 = vmatprep.subr.mxu0 0.0
        %737 = vmatpush1.msra.mxu0 %v700
        %738 = vmatprep.subr.mxu0 0.0
        %739 = vmatpush1.msra.mxu0 %v702
        %740 = vmatprep.subr.mxu0 0.0
        %741 = vmatpush1.msra.mxu0 %v704
        %742 = vmatprep.subr.mxu0 0.0
        %743 = vmatpush1.msra.mxu0 %v706
        %744 = vmatprep.subr.mxu0 0.0
        %745 = vmatpush1.msra.mxu0 %v708
        %746 = vmatprep.subr.mxu0 0.0
        %747 = vmatpush1.msra.mxu0 %v710
        %748 = vmatprep.subr.mxu0 0.0
        %749 = vmatpush1.msra.mxu0 %v712
        %750 = vmatprep.subr.mxu0 0.0
        %751 = vmatpush1.msra.mxu0 %v714
        %752 = vmatprep.subr.mxu0 0.0
        %753 = vmatpush1.msra.mxu0 %v716
        %754 = vmatprep.subr.mxu0 0.0
        %755 = vmatpush1.msra.mxu0 0.0
        %756 = vmatprep.subr.mxu0 0.0
        %757 = vmatpush1.msra.mxu0 0.0
        %758 = vmatprep.subr.mxu0 0.0
        %759 = vmatpush1.msra.mxu0 0.0
        %760 = vmatprep.subr.mxu0 0.0
        %761 = vmatpush1.msra.mxu0 0.0
        %762 = vmatprep.subr.mxu0 0.0
        %763 = vmatpush1.msra.mxu0 0.0
        %764 = vmatprep.subr.mxu0 0.0
        %765 = vmatpush1.msra.mxu0 0.0
        %766 = vmatprep.subr.mxu0 0.0
        %767 = vmatpush1.msra.mxu0 0.0
        %768 = vmatprep.subr.mxu0 0.0
        %769 = vmatpush1.msra.mxu0 0.0
        %770 = vmatprep.subr.mxu0 0.0
        %771 = vmatpush1.msra.mxu0 0.0
        %772 = vmatprep.subr.mxu0 0.0
        %773 = vmatpush1.msra.mxu0 0.0
        %774 = vmatprep.subr.mxu0 0.0
        %775 = vmatpush1.msra.mxu0 0.0
        %776 = vmatprep.subr.mxu0 0.0
        %777 = vmatpush1.msra.mxu0 0.0
        %778 = vmatprep.subr.mxu0 0.0
        %779 = vmatpush1.msra.mxu0 0.0
        %780 = vmatprep.subr.mxu0 0.0
        %781 = vmatpush1.msra.mxu0 0.0
        %782 = vmatprep.subr.mxu0 0.0
        %783 = vmatpush1.msra.mxu0 0.0
        %784 = vmatprep.subr.mxu0 0.0
        %785 = vmatpush1.msra.mxu0 0.0
        %786 = vmatprep.mubr.f32.mxu0 0.0
        %787 = vmatmul.mubr.f32.gmra.mrb[0].mxu0 %v619
        %v788 = vpop.f32.mrb[0].mxu0
        %v789 = vadd.f32 %v720, %v788
        %v790 = vpop.f32.mrb[0].mxu0
        %791 = vdwg.mxu0
        %792 = vst [vmem:[%s287] sm:$0xff] %v789
        %s793 = sand.u32 %s171, 1
        %s794 = scalar_lea.sflag [#allocation3], %s793
        %s795 = sand.u32 %s171, 1
        %s796 = smul.addr %s795, 8
        %s797 = scalar_lea.vmem [#allocation2], %s796
        // Predicated region
        $region41: #{tpu_custom_call.1} parent=39 // pred_check
          %p798 = pneg %p181
        $region42: #{tpu_custom_call.1} parent=39 // pred_check_branch
          %800 = sbr.rel (%p798) target = $region44
        $region43: #{tpu_custom_call.1} parent=39 // pred_region
          %s802 = ssub.s32 128, 128
          %803 = vsyncadd %s794, %s802
          %s804 = smul.addr %s23, 2
          %s805 = sadd.s32 %s24, %s804
          %s806 = smul.addr %s805, 128
          %s807 = scalar_lea.hbm %s5, %s806
          %s809 = sshll.u32 %s797, 4
          %s810 = int_to_ptr.vmem [resolvable:$true] %s809
          %812 = dma.vmem_to_hbm [thread:$0]  %s810, 128, %s807, %s794
        $region44: #{tpu_custom_call.1} parent=39 // pred_fallthru
          _
      $region40: #{tpu_custom_call.1} parent=5 // pred_fallthru
        _
      %p813 = scmp.le.s32.totalorder 2, %s14
      // Predicated region
      $region45: #{tpu_custom_call.1} parent=5 // pred_check
        %p814 = pneg %p813
      $region46: #{tpu_custom_call.1} parent=5 // pred_check_branch
        %816 = sbr.rel (%p814) target = $region48
      $region47: #{tpu_custom_call.1} parent=5 // pred_region
        %s817 = ssub.s32 %s14, 2
        // Predicated region
        $region49: #{tpu_custom_call.1} parent=47 // pred_check
          %p818 = pneg %p187
        $region50: #{tpu_custom_call.1} parent=47 // pred_check_branch
          %820 = sbr.rel (%p818) target = $region52
        $region51: #{tpu_custom_call.1} parent=47 // pred_region
          %s821 = sand.u32 %s172, 1
          %s822 = scalar_lea.sflag [#allocation3], %s821
          %s823 = sand.u32 %s172, 1
          %s824 = smul.addr %s823, 8
          %s825 = scalar_lea.vmem [#allocation2], %s824
          %826 = dma.done %s822, 128
        $region52: #{tpu_custom_call.1} parent=47 // pred_fallthru
          _
      $region48: #{tpu_custom_call.1} parent=5 // pred_fallthru
        _
    $region6: #{tpu_custom_call.1} parent=1 // loop_footer
      %s18 = sadd.s32 1, %s14
    $region7: #{tpu_custom_call.1} parent=1 // loop_footer_branch
      %13 = sbr.rel target = $region3
    $region8: #{tpu_custom_call.1} parent=1 // loop_exit
      _
    %827 = vsyncpa [#allocation3], 1
    %s828 = scalar_lea.sflag [#allocation3], 1
    %829 = vsyncpa %s828, 1

// kernel: tpu_custom_call.1
$region0: #{tpu_custom_call.1}
  #allocation0 [shape = 'u32[]', space=smem, size = 0x4, offset = 0x4, fixed_abs, tag = 'smem constant byte address 0x4 - core index']
  #allocation1 [shape = 'u32[144,128]{1,0:T(1,128)}', space=vmem, size = 0x12000, scoped, tag = 'internal scratch']
  %s0 = inlined_call_operand.vmem [shape: f32[8,256], index: 0, kind: input, shape index: {}]
  %s1 = inlined_call_operand.vmem [shape: f32[128,8], index: 1, kind: input, shape index: {}]
  %s2 = inlined_call_operand.vmem [shape: f32[128,1], index: 2, kind: input, shape index: {}]
  %s3 = inlined_call_operand.vmem [shape: f32[8,128], index: 3, kind: input, shape index: {}]
  %s4 = inlined_call_operand.vmem [shape: f32[8,1], index: 4, kind: input, shape index: {}]
  %s5 = inlined_call_operand.hbm [shape: f32[8,256], index: 5, kind: output, shape index: {}]
  %s6 = sld [smem:[#allocation0]]
  $region53: #{tpu_custom_call.1} parent=0
    _
  %s8 = ssub.s32 1, %s6
  %s9 = scalar_select 0, %s8, %s6
  $region1: #{tpu_custom_call.1} parent=0
    #allocation2 [shape = 'u8[8192]{0}', space=vmem, size = 0x2000, scoped, tag = 'output window, operand 0']
    #allocation3 [shape = 's32[2]{0}', space=sflag, size = 0x8, scoped, tag = 'scoped memory for tpu_custom_call.1']
    %10 = vsyncpa [#allocation3], 0
    %s11 = scalar_lea.sflag [#allocation3], 1
    %12 = vsyncpa %s11, 0
    loop: start=0, step=1, limit=4
    $region2: #{tpu_custom_call.1} parent=1 // loop_pre_header
      _
    $region3: #{tpu_custom_call.1} parent=1 // loop_header
      %s14 = sphi 0, %s18
      %p15 = scmp.ge.s32.totalorder %s14, 4
      %s21 = sphi 0, %s33
      %s22 = sphi 0, %s29
      %s23 = sphi 0, %s21
      %s24 = sphi 0, %s22
      %s25 = sphi 0, %s23
      %s26 = sphi 0, %s24
      %s36 = sphi 0, %s38
      %s39 = sphi 0, %s36
      %s40 = sphi 0, %s39
      %s56 = sphi 0, %s40
      %s62 = sphi 0, %s64
      %s65 = sphi 0, %s62
      %s66 = sphi 0, %s65
      %s82 = sphi 0, %s66
      %s88 = sphi 0, %s90
      %s91 = sphi 0, %s88
      %s92 = sphi 0, %s91
      %s108 = sphi 0, %s92
      %s114 = sphi 0, %s116
      %s117 = sphi 0, %s114
      %s118 = sphi 0, %s117
      %s134 = sphi 0, %s118
      %s140 = sphi 0, %s142
      %s143 = sphi 0, %s140
      %s144 = sphi 0, %s143
      %s160 = sphi 0, %s144
      %s168 = sphi 0, %s170
      %s171 = sphi 0, %s168
      %s172 = sphi 0, %s171
      %s188 = sphi 0, %s172
    $region4: #{tpu_custom_call.1} parent=1 // loop_header_branch
      %17 = sbr.rel (%p15) target = $region8
    $region5: #{tpu_custom_call.1} parent=1 // loop_body
      %s19 = ssub.s32 %s14, 1
      %s20 = ssub.s32 %s14, 2
      %s27 = sadd.s32 1, %s22
      %p28 = scmp.ge.s32.totalorder %s27, 2
      %s29 = scalar_select %p28, 0, %s27
      %s30 = sadd.s32 1, %s21
      %s31 = scalar_select %p28, %s30, %s21
      %p32 = scmp.ge.s32.totalorder %s31, 1
      %s33 = scalar_select %p32, 0, %s31
      %s34 = ssub.s32 %s22, %s29
      %p35 = scmp.eq.s32.totalorder %s34, 0
      %s37 = sadd.s32 %s36, 1
      %s38 = scalar_select %p35, %s36, %s37
      %p41 = pneg %p35
      %p42 = scmp.eq.s32.totalorder %s14, 1
      %p43 = por %p41, %p42
      %p44 = scmp.ne.s32.totalorder %s36, %s39
      %p45 = scmp.eq.s32.totalorder %s14, 0
      %p46 = por %p44, %p45
      %p47 = scmp.ne.s32.totalorder %s36, %s39
      %p48 = scmp.eq.s32.totalorder %s19, 1
      %p49 = por %p47, %p48
      %p50 = scmp.ne.s32.totalorder %s39, %s40
      %p51 = scmp.eq.s32.totalorder %s19, 0
      %p52 = por %p50, %p51
      %p53 = scmp.ne.s32.totalorder %s39, %s40
      %p54 = scmp.eq.s32.totalorder %s20, 1
      %p55 = por %p53, %p54
      %p57 = scmp.ne.s32.totalorder %s40, %s56
      %p58 = scmp.eq.s32.totalorder %s20, 0
      %p59 = por %p57, %p58
      %s60 = ssub.s32 %s21, %s33
      %p61 = scmp.eq.s32.totalorder %s60, 0
      %s63 = sadd.s32 %s62, 1
      %s64 = scalar_select %p61, %s62, %s63
      %p67 = pneg %p61
      %p68 = scmp.eq.s32.totalorder %s14, 1
      %p69 = por %p67, %p68
      %p70 = scmp.ne.s32.totalorder %s62, %s65
      %p71 = scmp.eq.s32.totalorder %s14, 0
      %p72 = por %p70, %p71
      %p73 = scmp.ne.s32.totalorder %s62, %s65
      %p74 = scmp.eq.s32.totalorder %s19, 1
      %p75 = por %p73, %p74
      %p76 = scmp.ne.s32.totalorder %s65, %s66
      %p77 = scmp.eq.s32.totalorder %s19, 0
      %p78 = por %p76, %p77
      %p79 = scmp.ne.s32.totalorder %s65, %s66
      %p80 = scmp.eq.s32.totalorder %s20, 1
      %p81 = por %p79, %p80
      %p83 = scmp.ne.s32.totalorder %s66, %s82
      %p84 = scmp.eq.s32.totalorder %s20, 0
      %p85 = por %p83, %p84
      %s86 = ssub.s32 %s21, %s33
      %p87 = scmp.eq.s32.totalorder %s86, 0
      %s89 = sadd.s32 %s88, 1
      %s90 = scalar_select %p87, %s88, %s89
      %p93 = pneg %p87
      %p94 = scmp.eq.s32.totalorder %s14, 1
      %p95 = por %p93, %p94
      %p96 = scmp.ne.s32.totalorder %s88, %s91
      %p97 = scmp.eq.s32.totalorder %s14, 0
      %p98 = por %p96, %p97
      %p99 = scmp.ne.s32.totalorder %s88, %s91
      %p100 = scmp.eq.s32.totalorder %s19, 1
      %p101 = por %p99, %p100
      %p102 = scmp.ne.s32.totalorder %s91, %s92
      %p103 = scmp.eq.s32.totalorder %s19, 0
      %p104 = por %p102, %p103
      %p105 = scmp.ne.s32.totalorder %s91, %s92
      %p106 = scmp.eq.s32.totalorder %s20, 1
      %p107 = por %p105, %p106
      %p109 = scmp.ne.s32.totalorder %s92, %s108
      %p110 = scmp.eq.s32.totalorder %s20, 0
      %p111 = por %p109, %p110
      %s112 = ssub.s32 %s21, %s33
      %p113 = scmp.eq.s32.totalorder %s112, 0
      %s115 = sadd.s32 %s114, 1
      %s116 = scalar_select %p113, %s114, %s115
      %p119 = pneg %p113
      %p120 = scmp.eq.s32.totalorder %s14, 1
      %p121 = por %p119, %p120
      %p122 = scmp.ne.s32.totalorder %s114, %s117
      %p123 = scmp.eq.s32.totalorder %s14, 0
      %p124 = por %p122, %p123
      %p125 = scmp.ne.s32.totalorder %s114, %s117
      %p126 = scmp.eq.s32.totalorder %s19, 1
      %p127 = por %p125, %p126
      %p128 = scmp.ne.s32.totalorder %s117, %s118
      %p129 = scmp.eq.s32.totalorder %s19, 0
      %p130 = por %p128, %p129
      %p131 = scmp.ne.s32.totalorder %s117, %s118
      %p132 = scmp.eq.s32.totalorder %s20, 1
      %p133 = por %p131, %p132
      %p135 = scmp.ne.s32.totalorder %s118, %s134
      %p136 = scmp.eq.s32.totalorder %s20, 0
      %p137 = por %p135, %p136
      %s138 = ssub.s32 %s21, %s33
      %p139 = scmp.eq.s32.totalorder %s138, 0
      %s141 = sadd.s32 %s140, 1
      %s142 = scalar_select %p139, %s140, %s141
      %p145 = pneg %p139
      %p146 = scmp.eq.s32.totalorder %s14, 1
      %p147 = por %p145, %p146
      %p148 = scmp.ne.s32.totalorder %s140, %s143
      %p149 = scmp.eq.s32.totalorder %s14, 0
      %p150 = por %p148, %p149
      %p151 = scmp.ne.s32.totalorder %s140, %s143
      %p152 = scmp.eq.s32.totalorder %s19, 1
      %p153 = por %p151, %p152
      %p154 = scmp.ne.s32.totalorder %s143, %s144
      %p155 = scmp.eq.s32.totalorder %s19, 0
      %p156 = por %p154, %p155
      %p157 = scmp.ne.s32.totalorder %s143, %s144
      %p158 = scmp.eq.s32.totalorder %s20, 1
      %p159 = por %p157, %p158
      %p161 = scmp.ne.s32.totalorder %s144, %s160
      %p162 = scmp.eq.s32.totalorder %s20, 0
      %p163 = por %p161, %p162
      %s164 = ssub.s32 %s21, %s33
      %s165 = ssub.s32 %s22, %s29
      %s166 = sor.u32 %s164, %s165
      %p167 = scmp.eq.s32.totalorder %s166, 0
      %s169 = sadd.s32 %s168, 1
      %s170 = scalar_select %p167, %s168, %s169
      %p173 = pneg %p167
      %p174 = scmp.eq.s32.totalorder %s14, 1
      %p175 = por %p173, %p174
      %p176 = scmp.ne.s32.totalorder %s168, %s171
      %p177 = scmp.eq.s32.totalorder %s14, 0
      %p178 = por %p176, %p177
      %p179 = scmp.ne.s32.totalorder %s168, %s171
      %p180 = scmp.eq.s32.totalorder %s19, 1
      %p181 = por %p179, %p180
      %p182 = scmp.ne.s32.totalorder %s171, %s172
      %p183 = scmp.eq.s32.totalorder %s19, 0
      %p184 = por %p182, %p183
      %p185 = scmp.ne.s32.totalorder %s171, %s172
      %p186 = scmp.eq.s32.totalorder %s20, 1
      %p187 = por %p185, %p186
      %p189 = scmp.ne.s32.totalorder %s172, %s188
      %p190 = scmp.eq.s32.totalorder %s20, 0
      %p191 = por %p189, %p190
      %p192 = scmp.le.s32.totalorder 1, %s14
      %p193 = scmp.lt.s32.totalorder %s14, 3
      %p194 = pnand %p192, %p193
      %p195 = pneg %p194
      // Predicated region
      $region9: #{tpu_custom_call.1} parent=5 // pred_check
        _
      $region10: #{tpu_custom_call.1} parent=5 // pred_check_branch
        %197 = sbr.rel (%p194) target = $region12
      $region11: #{tpu_custom_call.1} parent=5 // pred_region
        %s198 = ssub.s32 %s14, 1
        // Predicated region
        $region13: #{tpu_custom_call.1} parent=11 // pred_check
          %p199 = pneg %p78
        $region14: #{tpu_custom_call.1} parent=11 // pred_check_branch
          %201 = sbr.rel (%p199) target = $region16
        $region15: #{tpu_custom_call.1} parent=11 // pred_region
          %s202 = smul.u32 16, %s23
          %p203 = scmp.lt.s32.totalorder %s202, 15
          %s204 = scalar_select %p203, %s202, 15
          %s205 = smul.addr %s204, 8
          %s206 = scalar_lea.vmem %s1, %s205
          %s207 = smul.u32 16, %s23
        $region16: #{tpu_custom_call.1} parent=11 // pred_fallthru
          _
        // Predicated region
        $region17: #{tpu_custom_call.1} parent=11 // pred_check
          %p208 = pneg %p104
        $region18: #{tpu_custom_call.1} parent=11 // pred_check_branch
          %210 = sbr.rel (%p208) target = $region20
        $region19: #{tpu_custom_call.1} parent=11 // pred_region
          %s211 = smul.u32 16, %s23
          %p212 = scmp.lt.s32.totalorder %s211, 15
          %s213 = scalar_select %p212, %s211, 15
          %s214 = smul.addr %s213, 8
          %s215 = scalar_lea.vmem %s2, %s214
          %s216 = smul.u32 16, %s23
        $region20: #{tpu_custom_call.1} parent=11 // pred_fallthru
          _
        // Predicated region
        $region21: #{tpu_custom_call.1} parent=11 // pred_check
          %p217 = pneg %p130
        $region22: #{tpu_custom_call.1} parent=11 // pred_check_branch
          %219 = sbr.rel (%p217) target = $region24
        $region23: #{tpu_custom_call.1} parent=11 // pred_region
          %p220 = scmp.lt.s32.totalorder %s23, 0
          %s221 = scalar_select %p220, %s23, 0
          %s222 = smul.addr %s221, 8
          %s223 = scalar_lea.vmem %s3, %s222
        $region24: #{tpu_custom_call.1} parent=11 // pred_fallthru
          _
        // Predicated region
        $region25: #{tpu_custom_call.1} parent=11 // pred_check
          %p224 = pneg %p156
        $region26: #{tpu_custom_call.1} parent=11 // pred_check_branch
          %226 = sbr.rel (%p224) target = $region28
        $region27: #{tpu_custom_call.1} parent=11 // pred_region
          %p227 = scmp.lt.s32.totalorder %s23, 0
          %s228 = scalar_select %p227, %s23, 0
          %s229 = smul.addr %s228, 8
          %s230 = scalar_lea.vmem %s4, %s229
        $region28: #{tpu_custom_call.1} parent=11 // pred_fallthru
          _
      $region12: #{tpu_custom_call.1} parent=5 // pred_fallthru
        _
      %p231 = scmp.lt.s32.totalorder %s14, 2
      // Predicated region
      $region29: #{tpu_custom_call.1} parent=5 // pred_check
        %p232 = pneg %p231
      $region30: #{tpu_custom_call.1} parent=5 // pred_check_branch
        %234 = sbr.rel (%p232) target = $region32
      $region31: #{tpu_custom_call.1} parent=5 // pred_region
        // Predicated region
        $region33: #{tpu_custom_call.1} parent=31 // pred_check
          %p235 = pneg %p46
        $region34: #{tpu_custom_call.1} parent=31 // pred_check_branch
          %237 = sbr.rel (%p235) target = $region36
        $region35: #{tpu_custom_call.1} parent=31 // pred_region
          %p238 = scmp.lt.s32.totalorder %s22, 1
          %s239 = scalar_select %p238, %s22, 1
          %s240 = smul.addr %s239, 8
          %s241 = scalar_lea.vmem %s0, %s240
        $region36: #{tpu_custom_call.1} parent=31 // pred_fallthru
          _
      $region32: #{tpu_custom_call.1} parent=5 // pred_fallthru
        _
      %p242 = scmp.le.s32.totalorder 1, %s14
      %p243 = scmp.lt.s32.totalorder %s14, 3
      %p244 = pnand %p242, %p243
      %p245 = pneg %p244
      // Predicated region
      $region37: #{tpu_custom_call.1} parent=5 // pred_check
        _
      $region38: #{tpu_custom_call.1} parent=5 // pred_check_branch
        %247 = sbr.rel (%p244) target = $region40
      $region39: #{tpu_custom_call.1} parent=5 // pred_region
        %s248 = ssub.s32 %s14, 1
        %p249 = scmp.lt.s32.totalorder %s24, 1
        %s250 = scalar_select %p249, %s24, 1
        %s251 = smul.addr %s250, 8
        %s252 = scalar_lea.vmem %s0, %s251
        %p253 = pneg %p52
        %p254 = pneg %p49
        %s255 = smul.u32 16, %s23
        %p256 = scmp.lt.s32.totalorder %s255, 15
        %s257 = scalar_select %p256, %s255, 15
        %s258 = smul.addr %s257, 8
        %s259 = scalar_lea.vmem %s1, %s258
        %p260 = pneg %p78
        %p261 = pneg %p75
        %s262 = smul.u32 16, %s23
        %p263 = scmp.lt.s32.totalorder %s262, 15
        %s264 = scalar_select %p263, %s262, 15
        %s265 = smul.addr %s264, 8
        %s266 = scalar_lea.vmem %s2, %s265
        %p267 = pneg %p104
        %p268 = pneg %p101
        %p269 = scmp.lt.s32.totalorder %s23, 0
        %s270 = scalar_select %p269, %s23, 0
        %s271 = smul.addr %s270, 8
        %s272 = scalar_lea.vmem %s3, %s271
        %p273 = pneg %p130
        %p274 = pneg %p127
        %p275 = scmp.lt.s32.totalorder %s23, 0
        %s276 = scalar_select %p275, %s23, 0
        %s277 = smul.addr %s276, 8
        %s278 = scalar_lea.vmem %s4, %s277
        %p279 = pneg %p156
        %p280 = pneg %p153
        %p281 = pneg %p184
        %p282 = pneg %p181
        %s283 = sand.u32 %s171, 1
        %s284 = scalar_lea.sflag [#allocation3], %s283
        %s285 = sand.u32 %s171, 1
        %s286 = smul.addr %s285, 8
        %s287 = scalar_lea.vmem [#allocation2], %s286
        %p288 = scmp.lt.s32.totalorder %s24, 1
        %s289 = scalar_select %p288, %s24, 1
        %s290 = smul.addr %s289, 8
        %s291 = scalar_lea.vmem %s0, %s290
        %s292 = smul.u32 16, %s23
        %p293 = scmp.lt.s32.totalorder %s292, 15
        %s294 = scalar_select %p293, %s292, 15
        %s295 = smul.addr %s294, 8
        %s296 = scalar_lea.vmem %s1, %s295
        %s297 = smul.u32 16, %s23
        %s298 = smul.u32 16, %s23
        %p299 = scmp.lt.s32.totalorder %s298, 15
        %s300 = scalar_select %p299, %s298, 15
        %s301 = smul.addr %s300, 8
        %s302 = scalar_lea.vmem %s2, %s301
        %s303 = smul.u32 16, %s23
        %p304 = scmp.lt.s32.totalorder %s23, 0
        %s305 = scalar_select %p304, %s23, 0
        %s306 = smul.addr %s305, 8
        %s307 = scalar_lea.vmem %s3, %s306
        %p308 = scmp.lt.s32.totalorder %s23, 0
        %s309 = scalar_select %p308, %s23, 0
        %s310 = smul.addr %s309, 8
        %s311 = scalar_lea.vmem %s4, %s310
        %v312 = vld [vmem:[%s296] sm:$0xff]
        %v313 = vld [vmem:[%s296 + $0x8] sm:$0xff]
        %v314 = vld [vmem:[%s296 + $0x10] sm:$0xff]
        %v315 = vld [vmem:[%s296 + $0x18] sm:$0xff]
        %v316 = vld [vmem:[%s296 + $0x20] sm:$0xff]
        %v317 = vld [vmem:[%s296 + $0x28] sm:$0xff]
        %v318 = vld [vmem:[%s296 + $0x30] sm:$0xff]
        %v319 = vld [vmem:[%s296 + $0x38] sm:$0xff]
        %v320 = vld [vmem:[%s296 + $0x40] sm:$0xff]
        %v321 = vld [vmem:[%s296 + $0x48] sm:$0xff]
        %v322 = vld [vmem:[%s296 + $0x50] sm:$0xff]
        %v323 = vld [vmem:[%s296 + $0x58] sm:$0xff]
        %v324 = vld [vmem:[%s296 + $0x60] sm:$0xff]
        %v325 = vld [vmem:[%s296 + $0x68] sm:$0xff]
        %v326 = vld [vmem:[%s296 + $0x70] sm:$0xff]
        %v327 = vld [vmem:[%s296 + $0x78] sm:$0xff]
        %v328 = vld [vmem:[%s291] sm:$0xff]
        %v329 = vld [vmem:[%s302] sm:$0xff]
        %v330 = vld [vmem:[%s302 + $0x8] sm:$0xff]
        %v331 = vld [vmem:[%s302 + $0x10] sm:$0xff]
        %v332 = vld [vmem:[%s302 + $0x18] sm:$0xff]
        %v333 = vld [vmem:[%s302 + $0x20] sm:$0xff]
        %v334 = vld [vmem:[%s302 + $0x28] sm:$0xff]
        %v335 = vld [vmem:[%s302 + $0x30] sm:$0xff]
        %v336 = vld [vmem:[%s302 + $0x38] sm:$0xff]
        %v337 = vld [vmem:[%s302 + $0x40] sm:$0xff]
        %v338 = vld [vmem:[%s302 + $0x48] sm:$0xff]
        %v339 = vld [vmem:[%s302 + $0x50] sm:$0xff]
        %v340 = vld [vmem:[%s302 + $0x58] sm:$0xff]
        %v341 = vld [vmem:[%s302 + $0x60] sm:$0xff]
        %v342 = vld [vmem:[%s302 + $0x68] sm:$0xff]
        %v343 = vld [vmem:[%s302 + $0x70] sm:$0xff]
        %v344 = vld [vmem:[%s302 + $0x78] sm:$0xff]
        %346 = vset.pattern.permute.xlu0 0
        %347 = vperm.xlu0 %346, %v329
        %v348 = vpop.permute.xlu0 %347
        %351 = vset.pattern.permute.xlu0 0
        %352 = vperm.xlu0 %351, %v330
        %v353 = vpop.permute.xlu0 %352
        %356 = vset.pattern.permute.xlu0 0
        %357 = vperm.xlu0 %356, %v331
        %v358 = vpop.permute.xlu0 %357
        %361 = vset.pattern.permute.xlu0 0
        %362 = vperm.xlu0 %361, %v332
        %v363 = vpop.permute.xlu0 %362
        %366 = vset.pattern.permute.xlu0 0
        %367 = vperm.xlu0 %366, %v333
        %v368 = vpop.permute.xlu0 %367
        %371 = vset.pattern.permute.xlu0 0
        %372 = vperm.xlu0 %371, %v334
        %v373 = vpop.permute.xlu0 %372
        %376 = vset.pattern.permute.xlu0 0
        %377 = vperm.xlu0 %376, %v335
        %v378 = vpop.permute.xlu0 %377
        %381 = vset.pattern.permute.xlu0 0
        %382 = vperm.xlu0 %381, %v336
        %v383 = vpop.permute.xlu0 %382
        %386 = vset.pattern.permute.xlu0 0
        %387 = vperm.xlu0 %386, %v337
        %v388 = vpop.permute.xlu0 %387
        %391 = vset.pattern.permute.xlu0 0
        %392 = vperm.xlu0 %391, %v338
        %v393 = vpop.permute.xlu0 %392
        %396 = vset.pattern.permute.xlu0 0
        %397 = vperm.xlu0 %396, %v339
        %v398 = vpop.permute.xlu0 %397
        %401 = vset.pattern.permute.xlu0 0
        %402 = vperm.xlu0 %401, %v340
        %v403 = vpop.permute.xlu0 %402
        %406 = vset.pattern.permute.xlu0 0
        %407 = vperm.xlu0 %406, %v341
        %v408 = vpop.permute.xlu0 %407
        %411 = vset.pattern.permute.xlu0 0
        %412 = vperm.xlu0 %411, %v342
        %v413 = vpop.permute.xlu0 %412
        %416 = vset.pattern.permute.xlu0 0
        %417 = vperm.xlu0 %416, %v343
        %v418 = vpop.permute.xlu0 %417
        %421 = vset.pattern.permute.xlu0 0
        %422 = vperm.xlu0 %421, %v344
        %v423 = vpop.permute.xlu0 %422
        %vm425 = vcmask 64512
        %v427 = vsel %vm425, %v312, 0
        %v430 = vsel %vm425, %v313, 0
        %v433 = vsel %vm425, %v314, 0
        %v436 = vsel %vm425, %v315, 0
        %v439 = vsel %vm425, %v316, 0
        %v442 = vsel %vm425, %v317, 0
        %v445 = vsel %vm425, %v318, 0
        %v448 = vsel %vm425, %v319, 0
        %v451 = vsel %vm425, %v320, 0
        %v454 = vsel %vm425, %v321, 0
        %v457 = vsel %vm425, %v322, 0
        %v460 = vsel %vm425, %v323, 0
        %v463 = vsel %vm425, %v324, 0
        %v466 = vsel %vm425, %v325, 0
        %v469 = vsel %vm425, %v326, 0
        %v472 = vsel %vm425, %v327, 0
        %474 = vmatprep.subr.mxu0 0.0
        %475 = vmatpush1.msra.mxu0 %v328
        %476 = vmatprep.subr.mxu0 0.0
        %477 = vmatpush1.msra.mxu0 0.0
        %478 = vmatprep.subr.mxu0 0.0
        %479 = vmatpush1.msra.mxu0 0.0
        %480 = vmatprep.subr.mxu0 0.0
        %481 = vmatpush1.msra.mxu0 0.0
        %482 = vmatprep.subr.mxu0 0.0
        %483 = vmatpush1.msra.mxu0 0.0
        %484 = vmatprep.subr.mxu0 0.0
        %485 = vmatpush1.msra.mxu0 0.0
        %486 = vmatprep.subr.mxu0 0.0
        %487 = vmatpush1.msra.mxu0 0.0
        %488 = vmatprep.subr.mxu0 0.0
        %489 = vmatpush1.msra.mxu0 0.0
        %490 = vmatprep.subr.mxu0 0.0
        %491 = vmatpush1.msra.mxu0 0.0
        %492 = vmatprep.subr.mxu0 0.0
        %493 = vmatpush1.msra.mxu0 0.0
        %494 = vmatprep.subr.mxu0 0.0
        %495 = vmatpush1.msra.mxu0 0.0
        %496 = vmatprep.subr.mxu0 0.0
        %497 = vmatpush1.msra.mxu0 0.0
        %498 = vmatprep.subr.mxu0 0.0
        %499 = vmatpush1.msra.mxu0 0.0
        %500 = vmatprep.subr.mxu0 0.0
        %501 = vmatpush1.msra.mxu0 0.0
        %502 = vmatprep.subr.mxu0 0.0
        %503 = vmatpush1.msra.mxu0 0.0
        %504 = vmatprep.subr.mxu0 0.0
        %505 = vmatpush1.msra.mxu0 0.0
        %506 = vmatprep.subr.mxu0 0.0
        %507 = vmatpush1.msra.mxu0 0.0
        %508 = vmatprep.subr.mxu0 0.0
        %509 = vmatpush1.msra.mxu0 0.0
        %510 = vmatprep.subr.mxu0 0.0
        %511 = vmatpush1.msra.mxu0 0.0
        %512 = vmatprep.subr.mxu0 0.0
        %513 = vmatpush1.msra.mxu0 0.0
        %514 = vmatprep.subr.mxu0 0.0
        %515 = vmatpush1.msra.mxu0 0.0
        %516 = vmatprep.subr.mxu0 0.0
        %517 = vmatpush1.msra.mxu0 0.0
        %518 = vmatprep.subr.mxu0 0.0
        %519 = vmatpush1.msra.mxu0 0.0
        %520 = vmatprep.subr.mxu0 0.0
        %521 = vmatpush1.msra.mxu0 0.0
        %522 = vmatprep.subr.mxu0 0.0
        %523 = vmatpush1.msra.mxu0 0.0
        %524 = vmatprep.subr.mxu0 0.0
        %525 = vmatpush1.msra.mxu0 0.0
        %526 = vmatprep.subr.mxu0 0.0
        %527 = vmatpush1.msra.mxu0 0.0
        %528 = vmatprep.subr.mxu0 0.0
        %529 = vmatpush1.msra.mxu0 0.0
        %530 = vmatprep.subr.mxu0 0.0
        %531 = vmatpush1.msra.mxu0 0.0
        %532 = vmatprep.subr.mxu0 0.0
        %533 = vmatpush1.msra.mxu0 0.0
        %534 = vmatprep.subr.mxu0 0.0
        %535 = vmatpush1.msra.mxu0 0.0
        %536 = vmatprep.subr.mxu0 0.0
        %537 = vmatpush1.msra.mxu0 0.0
        %538 = vmatprep.mubr.f32.mxu0 0.0
        %539 = vmatmul.mubr.f32.gmra.mrb[0].mxu0 %v427
        %v540 = vpop.f32.mrb[0].mxu0
        %v541 = vadd.f32 %v348, %v540
        %v542 = vpop.f32.mrb[0].mxu0
        %543 = vmatprep.mubr.f32.mxu0 0.0
        %544 = vmatmul.mubr.f32.gmra.mrb[0].mxu0 %v430
        %v545 = vpop.f32.mrb[0].mxu0
        %v546 = vadd.f32 %v353, %v545
        %v547 = vpop.f32.mrb[0].mxu0
        %548 = vmatprep.mubr.f32.mxu0 0.0
        %549 = vmatmul.mubr.f32.gmra.mrb[0].mxu0 %v433
        %v550 = vpop.f32.mrb[0].mxu0
        %v551 = vadd.f32 %v358, %v550
        %v552 = vpop.f32.mrb[0].mxu0
        %553 = vmatprep.mubr.f32.mxu0 0.0
        %554 = vmatmul.mubr.f32.gmra.mrb[0].mxu0 %v436
        %v555 = vpop.f32.mrb[0].mxu0
        %v556 = vadd.f32 %v363, %v555
        %v557 = vpop.f32.mrb[0].mxu0
        %558 = vmatprep.mubr.f32.mxu0 0.0
        %559 = vmatmul.mubr.f32.gmra.mrb[0].mxu0 %v439
        %v560 = vpop.f32.mrb[0].mxu0
        %v561 = vadd.f32 %v368, %v560
        %v562 = vpop.f32.mrb[0].mxu0
        %563 = vmatprep.mubr.f32.mxu0 0.0
        %564 = vmatmul.mubr.f32.gmra.mrb[0].mxu0 %v442
        %v565 = vpop.f32.mrb[0].mxu0
        %v566 = vadd.f32 %v373, %v565
        %v567 = vpop.f32.mrb[0].mxu0
        %568 = vmatprep.mubr.f32.mxu0 0.0
        %569 = vmatmul.mubr.f32.gmra.mrb[0].mxu0 %v445
        %v570 = vpop.f32.mrb[0].mxu0
        %v571 = vadd.f32 %v378, %v570
        %v572 = vpop.f32.mrb[0].mxu0
        %573 = vmatprep.mubr.f32.mxu0 0.0
        %574 = vmatmul.mubr.f32.gmra.mrb[0].mxu0 %v448
        %v575 = vpop.f32.mrb[0].mxu0
        %v576 = vadd.f32 %v383, %v575
        %v577 = vpop.f32.mrb[0].mxu0
        %578 = vmatprep.mubr.f32.mxu0 0.0
        %579 = vmatmul.mubr.f32.gmra.mrb[0].mxu0 %v451
        %v580 = vpop.f32.mrb[0].mxu0
        %v581 = vadd.f32 %v388, %v580
        %v582 = vpop.f32.mrb[0].mxu0
        %583 = vmatprep.mubr.f32.mxu0 0.0
        %584 = vmatmul.mubr.f32.gmra.mrb[0].mxu0 %v454
        %v585 = vpop.f32.mrb[0].mxu0
        %v586 = vadd.f32 %v393, %v585
        %v587 = vpop.f32.mrb[0].mxu0
        %588 = vmatprep.mubr.f32.mxu0 0.0
        %589 = vmatmul.mubr.f32.gmra.mrb[0].mxu0 %v457
        %v590 = vpop.f32.mrb[0].mxu0
        %v591 = vadd.f32 %v398, %v590
        %v592 = vpop.f32.mrb[0].mxu0
        %593 = vmatprep.mubr.f32.mxu0 0.0
        %594 = vmatmul.mubr.f32.gmra.mrb[0].mxu0 %v460
        %v595 = vpop.f32.mrb[0].mxu0
        %v596 = vadd.f32 %v403, %v595
        %v597 = vpop.f32.mrb[0].mxu0
        %598 = vmatprep.mubr.f32.mxu0 0.0
        %599 = vmatmul.mubr.f32.gmra.mrb[0].mxu0 %v463
        %v600 = vpop.f32.mrb[0].mxu0
        %v601 = vadd.f32 %v408, %v600
        %v602 = vpop.f32.mrb[0].mxu0
        %603 = vmatprep.mubr.f32.mxu0 0.0
        %604 = vmatmul.mubr.f32.gmra.mrb[0].mxu0 %v466
        %v605 = vpop.f32.mrb[0].mxu0
        %v606 = vadd.f32 %v413, %v605
        %v607 = vpop.f32.mrb[0].mxu0
        %608 = vmatprep.mubr.f32.mxu0 0.0
        %609 = vmatmul.mubr.f32.gmra.mrb[0].mxu0 %v469
        %v610 = vpop.f32.mrb[0].mxu0
        %v611 = vadd.f32 %v418, %v610
        %v612 = vpop.f32.mrb[0].mxu0
        %613 = vmatprep.mubr.f32.mxu0 0.0
        %614 = vmatmul.mubr.f32.gmra.mrb[0].mxu0 %v472
        %v615 = vpop.f32.mrb[0].mxu0
        %v616 = vadd.f32 %v423, %v615
        %v617 = vpop.f32.mrb[0].mxu0
        %618 = vdwg.mxu0
        %v619 = vld [vmem:[%s307] sm:$0xff]
        %v620 = vld [vmem:[%s311] sm:$0xff]
        %v621 = vxor.u32 %v541, 2147483648
        %v622 = vxor.u32 %v546, 2147483648
        %v623 = vxor.u32 %v551, 2147483648
        %v624 = vxor.u32 %v556, 2147483648
        %v625 = vxor.u32 %v561, 2147483648
        %v626 = vxor.u32 %v566, 2147483648
        %v627 = vxor.u32 %v571, 2147483648
        %v628 = vxor.u32 %v576, 2147483648
        %v629 = vxor.u32 %v581, 2147483648
        %v630 = vxor.u32 %v586, 2147483648
        %v631 = vxor.u32 %v591, 2147483648
        %v632 = vxor.u32 %v596, 2147483648
        %v633 = vxor.u32 %v601, 2147483648
        %v634 = vxor.u32 %v606, 2147483648
        %v635 = vxor.u32 %v611, 2147483648
        %v636 = vxor.u32 %v616, 2147483648
        %v637 = vmul.f32 %v621, 1.442695
        %v638 = vpow.pop %v637
        %v639 = vmul.f32 %v622, 1.442695
        %v640 = vpow.pop %v639
        %v641 = vmul.f32 %v623, 1.442695
        %v642 = vpow.pop %v641
        %v643 = vmul.f32 %v624, 1.442695
        %v644 = vpow.pop %v643
        %v645 = vmul.f32 %v625, 1.442695
        %v646 = vpow.pop %v645
        %v647 = vmul.f32 %v626, 1.442695
        %v648 = vpow.pop %v647
        %v649 = vmul.f32 %v627, 1.442695
        %v650 = vpow.pop %v649
        %v651 = vmul.f32 %v628, 1.442695
        %v652 = vpow.pop %v651
        %v653 = vmul.f32 %v629, 1.442695
        %v654 = vpow.pop %v653
        %v655 = vmul.f32 %v630, 1.442695
        %v656 = vpow.pop %v655
        %v657 = vmul.f32 %v631, 1.442695
        %v658 = vpow.pop %v657
        %v659 = vmul.f32 %v632, 1.442695
        %v660 = vpow.pop %v659
        %v661 = vmul.f32 %v633, 1.442695
        %v662 = vpow.pop %v661
        %v663 = vmul.f32 %v634, 1.442695
        %v664 = vpow.pop %v663
        %v665 = vmul.f32 %v635, 1.442695
        %v666 = vpow.pop %v665
        %v667 = vmul.f32 %v636, 1.442695
        %v668 = vpow.pop %v667
        %v669 = vadd.f32 %v638, 1.0
        %v670 = vadd.f32 %v640, 1.0
        %v671 = vadd.f32 %v642, 1.0
        %v672 = vadd.f32 %v644, 1.0
        %v673 = vadd.f32 %v646, 1.0
        %v674 = vadd.f32 %v648, 1.0
        %v675 = vadd.f32 %v650, 1.0
        %v676 = vadd.f32 %v652, 1.0
        %v677 = vadd.f32 %v654, 1.0
        %v678 = vadd.f32 %v656, 1.0
        %v679 = vadd.f32 %v658, 1.0
        %v680 = vadd.f32 %v660, 1.0
        %v681 = vadd.f32 %v662, 1.0
        %v682 = vadd.f32 %v664, 1.0
        %v683 = vadd.f32 %v666, 1.0
        %v684 = vadd.f32 %v668, 1.0
        %v685 = vrcp.pop %v669
        %v686 = vmul.f32 1.0, %v685
        %v687 = vrcp.pop %v670
        %v688 = vmul.f32 1.0, %v687
        %v689 = vrcp.pop %v671
        %v690 = vmul.f32 1.0, %v689
        %v691 = vrcp.pop %v672
        %v692 = vmul.f32 1.0, %v691
        %v693 = vrcp.pop %v673
        %v694 = vmul.f32 1.0, %v693
        %v695 = vrcp.pop %v674
        %v696 = vmul.f32 1.0, %v695
        %v697 = vrcp.pop %v675
        %v698 = vmul.f32 1.0, %v697
        %v699 = vrcp.pop %v676
        %v700 = vmul.f32 1.0, %v699
        %v701 = vrcp.pop %v677
        %v702 = vmul.f32 1.0, %v701
        %v703 = vrcp.pop %v678
        %v704 = vmul.f32 1.0, %v703
        %v705 = vrcp.pop %v679
        %v706 = vmul.f32 1.0, %v705
        %v707 = vrcp.pop %v680
        %v708 = vmul.f32 1.0, %v707
        %v709 = vrcp.pop %v681
        %v710 = vmul.f32 1.0, %v709
        %v711 = vrcp.pop %v682
        %v712 = vmul.f32 1.0, %v711
        %v713 = vrcp.pop %v683
        %v714 = vmul.f32 1.0, %v713
        %v715 = vrcp.pop %v684
        %v716 = vmul.f32 1.0, %v715
        %718 = vset.pattern.permute.xlu0 0
        %719 = vperm.xlu0 %718, %v620
        %v720 = vpop.permute.xlu0 %719
        %722 = vmatprep.subr.mxu0 0.0
        %723 = vmatpush1.msra.mxu0 %v686
        %724 = vmatprep.subr.mxu0 0.0
        %725 = vmatpush1.msra.mxu0 %v688
        %726 = vmatprep.subr.mxu0 0.0
        %727 = vmatpush1.msra.mxu0 %v690
        %728 = vmatprep.subr.mxu0 0.0
        %729 = vmatpush1.msra.mxu0 %v692
        %730 = vmatprep.subr.mxu0 0.0
        %731 = vmatpush1.msra.mxu0 %v694
        %732 = vmatprep.subr.mxu0 0.0
        %733 = vmatpush1.msra.mxu0 %v696
        %734 = vmatprep.subr.mxu0 0.0
        %735 = vmatpush1.msra.mxu0 %v698
        %736 = vmatprep.subr.mxu0 0.0
        %737 = vmatpush1.msra.mxu0 %v700
        %738 = vmatprep.subr.mxu0 0.0
        %739 = vmatpush1.msra.mxu0 %v702
        %740 = vmatprep.subr.mxu0 0.0
        %741 = vmatpush1.msra.mxu0 %v704
        %742 = vmatprep.subr.mxu0 0.0
        %743 = vmatpush1.msra.mxu0 %v706
        %744 = vmatprep.subr.mxu0 0.0
        %745 = vmatpush1.msra.mxu0 %v708
        %746 = vmatprep.subr.mxu0 0.0
        %747 = vmatpush1.msra.mxu0 %v710
        %748 = vmatprep.subr.mxu0 0.0
        %749 = vmatpush1.msra.mxu0 %v712
        %750 = vmatprep.subr.mxu0 0.0
        %751 = vmatpush1.msra.mxu0 %v714
        %752 = vmatprep.subr.mxu0 0.0
        %753 = vmatpush1.msra.mxu0 %v716
        %754 = vmatprep.subr.mxu0 0.0
        %755 = vmatpush1.msra.mxu0 0.0
        %756 = vmatprep.subr.mxu0 0.0
        %757 = vmatpush1.msra.mxu0 0.0
        %758 = vmatprep.subr.mxu0 0.0
        %759 = vmatpush1.msra.mxu0 0.0
        %760 = vmatprep.subr.mxu0 0.0
        %761 = vmatpush1.msra.mxu0 0.0
        %762 = vmatprep.subr.mxu0 0.0
        %763 = vmatpush1.msra.mxu0 0.0
        %764 = vmatprep.subr.mxu0 0.0
        %765 = vmatpush1.msra.mxu0 0.0
        %766 = vmatprep.subr.mxu0 0.0
        %767 = vmatpush1.msra.mxu0 0.0
        %768 = vmatprep.subr.mxu0 0.0
        %769 = vmatpush1.msra.mxu0 0.0
        %770 = vmatprep.subr.mxu0 0.0
        %771 = vmatpush1.msra.mxu0 0.0
        %772 = vmatprep.subr.mxu0 0.0
        %773 = vmatpush1.msra.mxu0 0.0
        %774 = vmatprep.subr.mxu0 0.0
        %775 = vmatpush1.msra.mxu0 0.0
        %776 = vmatprep.subr.mxu0 0.0
        %777 = vmatpush1.msra.mxu0 0.0
        %778 = vmatprep.subr.mxu0 0.0
        %779 = vmatpush1.msra.mxu0 0.0
        %780 = vmatprep.subr.mxu0 0.0
        %781 = vmatpush1.msra.mxu0 0.0
        %782 = vmatprep.subr.mxu0 0.0
        %783 = vmatpush1.msra.mxu0 0.0
        %784 = vmatprep.subr.mxu0 0.0
        %785 = vmatpush1.msra.mxu0 0.0
        %786 = vmatprep.mubr.f32.mxu0 0.0
        %787 = vmatmul.mubr.f32.gmra.mrb[0].mxu0 %v619
        %v788 = vpop.f32.mrb[0].mxu0
        %v789 = vadd.f32 %v720, %v788
        %v790 = vpop.f32.mrb[0].mxu0
        %791 = vdwg.mxu0
        %792 = vst [vmem:[%s287] sm:$0xff] %v789
        %s793 = sand.u32 %s171, 1
        %s794 = scalar_lea.sflag [#allocation3], %s793
        %s795 = sand.u32 %s171, 1
        %s796 = smul.addr %s795, 8
        %s797 = scalar_lea.vmem [#allocation2], %s796
        // Predicated region
        $region41: #{tpu_custom_call.1} parent=39 // pred_check
          %p798 = pneg %p181
        $region42: #{tpu_custom_call.1} parent=39 // pred_check_branch
          %800 = sbr.rel (%p798) target = $region44
        $region43: #{tpu_custom_call.1} parent=39 // pred_region
          %s802 = ssub.s32 128, 128
          %803 = vsyncadd %s794, %s802
          %s804 = smul.addr %s23, 2
          %s805 = sadd.s32 %s24, %s804
          %s806 = smul.addr %s805, 128
          %s807 = scalar_lea.hbm %s5, %s806
          %s809 = sshll.u32 %s797, 4
          %s810 = int_to_ptr.vmem [resolvable:$true] %s809
          %812 = dma.vmem_to_hbm [thread:$0]  %s810, 128, %s807, %s794
        $region44: #{tpu_custom_call.1} parent=39 // pred_fallthru
          _
      $region40: #{tpu_custom_call.1} parent=5 // pred_fallthru
        _
      %p813 = scmp.le.s32.totalorder 2, %s14
      // Predicated region
      $region45: #{tpu_custom_call.1} parent=5 // pred_check
        %p814 = pneg %p813
      $region46: #{tpu_custom_call.1} parent=5 // pred_check_branch
        %816 = sbr.rel (%p814) target = $region48
      $region47: #{tpu_custom_call.1} parent=5 // pred_region
        %s817 = ssub.s32 %s14, 2
        // Predicated region
        $region49: #{tpu_custom_call.1} parent=47 // pred_check
          %p818 = pneg %p187
        $region50: #{tpu_custom_call.1} parent=47 // pred_check_branch
          %820 = sbr.rel (%p818) target = $region52
        $region51: #{tpu_custom_call.1} parent=47 // pred_region
          %s821 = sand.u32 %s172, 1
          %s822 = scalar_lea.sflag [#allocation3], %s821
          %s823 = sand.u32 %s172, 1
          %s824 = smul.addr %s823, 8
          %s825 = scalar_lea.vmem [#allocation2], %s824
          %826 = dma.done %s822, 128
        $region52: #{tpu_custom_call.1} parent=47 // pred_fallthru
          _
      $region48: #{tpu_custom_call.1} parent=5 // pred_fallthru
        _
    $region6: #{tpu_custom_call.1} parent=1 // loop_footer
      %s18 = sadd.s32 1, %s14
    $region7: #{tpu_custom_call.1} parent=1 // loop_footer_branch
      %13 = sbr.rel target = $region3
    $region8: #{tpu_custom_call.1} parent=1 // loop_exit
      _
    %827 = vsyncpa [#allocation3], 1
    %s828 = scalar_lea.sflag [#allocation3], 1
    %829 = vsyncpa %s828, 1

</llo_original>
